<compile_context>
chip_gen: v7x
topology: tpu7x:2x2x1
jax: 0.10.0
libtpu: 0.0.40
codegen_flags: <defaults>
</compile_context>

<pallas_src>
import jax
import jax.numpy as jnp
import numpy as np
from jax import lax
from jax.experimental import pallas as pl
from jax.experimental.pallas import tpu as pltpu

INPUT_SIZE = 1
HIDDEN = 64
NUM_LAYERS = 2
OUTPUT_SIZE = 1


# ----------------------------------------------------------------------------------
# Kernel
# ----------------------------------------------------------------------------------
def lstm_kernel(x_ref, wih0_ref, whh0_ref, b0_ref,
                w1_ref, b1_ref, wfc_ref, bfc_ref,
                out_ref, gproj_s):
    H = HIDDEN
    T, Bp, _ = x_ref.shape

    # -------- hoisted, loop-invariant work ------------------------------------
    # Layer-0 input projection for ALL timesteps at once.  input_size == 1, so the
    # contraction is just a lane-broadcast multiply (VPU) -- no per-step MXU push.
    gproj_s[...] = (x_ref[...] * wih0_ref[...][None, :, :]
                    + b0_ref[...][None, :, :])                      # (T, Bp, 4H)

    w_hh0 = whh0_ref[...]                                           # (H, 4H)
    w_1 = w1_ref[...]                                               # (2H, 4H)
    b1_b = jnp.broadcast_to(b1_ref[...], (Bp, 4 * H))               # hoisted broadcast

    # Packed gate order is [i, f, o, g]:
    #   [:3H]  -> sigmoid (i, f, o) in one contiguous 192-lane EUP slice
    #   [3H:]  -> tanh (g)
    def step(t, carry):
        h0, c0, h1, c1 = carry

        # ---- layer 0: recurrent matmul only (input part precomputed) ----------
        g0 = gproj_s[t] + jnp.dot(h0, w_hh0, preferred_element_type=jnp.float32)
        s0 = jax.nn.sigmoid(g0[:, :3 * H])
        g0t = jnp.tanh(g0[:, 3 * H:])
        c0n = s0[:, H:2 * H] * c0 + s0[:, :H] * g0t
        h0n = s0[:, 2 * H:] * jnp.tanh(c0n)

        # ---- layer 1: single fused K = 2H = 128 matmul -------------------------
        # (inter-layer dropout is identity in eval mode)
        hcat = jnp.concatenate([h0n, h1], axis=1)                   # (Bp, 2H)
        g1 = jnp.dot(hcat, w_1, preferred_element_type=jnp.float32) + b1_b
        s1 = jax.nn.sigmoid(g1[:, :3 * H])
        g1t = jnp.tanh(g1[:, 3 * H:])
        c1n = s1[:, H:2 * H] * c1 + s1[:, :H] * g1t
        h1n = s1[:, 2 * H:] * jnp.tanh(c1n)

        return h0n, c0n, h1n, c1n

    zeros = jnp.zeros((Bp, H), jnp.float32)
    _, _, h1_last, _ = lax.fori_loop(0, T, step, (zeros, zeros, zeros, zeros),
                                     unroll=(T <= 32))

    # Final fc head on the last hidden state of the top layer.
    out_ref[...] = (jnp.dot(h1_last, wfc_ref[...], preferred_element_type=jnp.float32)
                    + bfc_ref[...]).astype(out_ref.dtype)


# ----------------------------------------------------------------------------------
# Wrapper
# ----------------------------------------------------------------------------------
def _permute_ifgo_to_ifog(w):
    """Permute the gate axis (last dim, size 4H) from [i,f,g,o] to [i,f,o,g]."""
    H = HIDDEN
    return jnp.concatenate(
        [w[..., 0:H], w[..., H:2 * H], w[..., 3 * H:4 * H], w[..., 2 * H:3 * H]],
        axis=-1)


def pack_params(p):
    """Convert canonical (PyTorch-layout) params into the kernel's packed layout."""
    wih0 = _permute_ifgo_to_ifog(p["weight_ih_l0"].T)                       # (IN, 4H)
    whh0 = _permute_ifgo_to_ifog(p["weight_hh_l0"].T)                       # (H, 4H)
    b0 = _permute_ifgo_to_ifog((p["bias_ih_l0"] + p["bias_hh_l0"])[None, :])
    # Fused layer-1 weight: rows [0:H] multiply h0_t, rows [H:2H] multiply h1_{t-1}.
    w1 = _permute_ifgo_to_ifog(
        jnp.concatenate([p["weight_ih_l1"].T, p["weight_hh_l1"].T], axis=0))  # (2H, 4H)
    b1 = _permute_ifgo_to_ifog((p["bias_ih_l1"] + p["bias_hh_l1"])[None, :])
    return {
        "wih0": wih0, "whh0": whh0, "b0": b0,
        "w1": w1, "b1": b1,
        "wfc": p["fc_w"].T,            # (H, OUT)
        "bfc": p["fc_b"][None, :],     # (1, OUT)
    }


def lstm_forward(x_btf, params):
    """x_btf: (B, T, input_size) float32 (PyTorch batch_first). Returns (B, output_size)."""
    B, T, F = x_btf.shape
    assert F == INPUT_SIZE == 1, "kernel assumes input_size == 1 (as in the reference model)"

    packed = pack_params(params)

    # Time-major layout; pad batch to the 8-sublane width (free, improves vreg layout).
    Bp = max(8, ((B + 7) // 8) * 8)
    x_tbf = jnp.transpose(x_btf, (1, 0, 2))
    if Bp != B:
        x_tbf = jnp.pad(x_tbf, ((0, 0), (0, Bp - B), (0, 0)))

    vmem_spec = lambda: pl.BlockSpec(memory_space=pltpu.MemorySpace.VMEM)

    out = pl.pallas_call(
        lstm_kernel,
        out_shape=jax.ShapeDtypeStruct((Bp, OUTPUT_SIZE), jnp.float32),
        in_specs=[vmem_spec() for _ in range(8)],
        out_specs=vmem_spec(),
        scratch_shapes=[pltpu.VMEM((T, Bp, 4 * HIDDEN), jnp.float32)],
    )(x_tbf,
      packed["wih0"], packed["whh0"], packed["b0"],
      packed["w1"], packed["b1"],
      packed["wfc"], packed["bfc"])

    return out[:B]


# ----------------------------------------------------------------------------------
# Params (canonical PyTorch layout) + pure-JAX reference
# ----------------------------------------------------------------------------------
def init_params(key):
    """Deterministic init mimicking PyTorch's U(-1/sqrt(H), 1/sqrt(H)), canonical layout."""
    bound = 1.0 / np.sqrt(HIDDEN)
    ks = jax.random.split(key, 10)
    u = lambda k, shape: jax.random.uniform(k, shape, jnp.float32, -bound, bound)
    return {
        "weight_ih_l0": u(ks[0], (4 * HIDDEN, INPUT_SIZE)),
        "weight_hh_l0": u(ks[1], (4 * HIDDEN, HIDDEN)),
        "bias_ih_l0":   u(ks[2], (4 * HIDDEN,)),
        "bias_hh_l0":   u(ks[3], (4 * HIDDEN,)),
        "weight_ih_l1": u(ks[4], (4 * HIDDEN, HIDDEN)),
        "weight_hh_l1": u(ks[5], (4 * HIDDEN, HIDDEN)),
        "bias_ih_l1":   u(ks[6], (4 * HIDDEN,)),
        "bias_hh_l1":   u(ks[7], (4 * HIDDEN,)),
        "fc_w":         u(ks[8], (OUTPUT_SIZE, HIDDEN)),
        "fc_b":         u(ks[9], (OUTPUT_SIZE,)),
    }


def ref_forward(x_btf, p):
    """Pure-JAX reference of the PyTorch forward (eval mode, gate order [i,f,g,o])."""
    B, T, _ = x_btf.shape
    H = HIDDEN
    h = [jnp.zeros((B, H), jnp.float32) for _ in range(NUM_LAYERS)]
    c = [jnp.zeros((B, H), jnp.float32) for _ in range(NUM_LAYERS)]
    names = [("weight_ih_l0", "weight_hh_l0", "bias_ih_l0", "bias_hh_l0"),
             ("weight_ih_l1", "weight_hh_l1", "bias_ih_l1", "bias_hh_l1")]
    for t in range(T):
        inp = x_btf[:, t, :]
        for l in range(NUM_LAYERS):
            wih, whh, bih, bhh = (p[n] for n in names[l])
            g = inp @ wih.T + h[l] @ whh.T + bih + bhh
            i_g = jax.nn.sigmoid(g[:, 0:H])
            f_g = jax.nn.sigmoid(g[:, H:2 * H])
            g_g = jnp.tanh(g[:, 2 * H:3 * H])
            o_g = jax.nn.sigmoid(g[:, 3 * H:])
            c[l] = f_g * c[l] + i_g * g_g
            h[l] = o_g * jnp.tanh(c[l])
            inp = h[l]
    return h[-1] @ p["fc_w"].T + p["fc_b"]


if __name__ == "__main__":
    key = jax.random.PRNGKey(0)
    k_param, k_x = jax.random.split(key)

    B, T = 2, 8  # small shapes consistent with (batch, seq, input_size=1)
    x = jax.random.normal(k_x, (B, T, INPUT_SIZE), jnp.float32)
    params = init_params(k_param)

    out = lstm_forward(x, params)
    out = jax.block_until_ready(out)

    ref = ref_forward(x, params)
    np.testing.assert_allclose(np.asarray(out), np.asarray(ref), atol=1e-4, rtol=1e-4)

    print("KERNEL_OK")
</pallas_src>

<mosaic_0001>
module attributes {stable_mosaic.version = 11 : i64} {
  func.func @lstm_kernel(%arg0: memref<8x8x1xf32, #tpu.memory_space<vmem>>, %arg1: memref<1x256xf32, #tpu.memory_space<vmem>>, %arg2: memref<64x256xf32, #tpu.memory_space<vmem>>, %arg3: memref<1x256xf32, #tpu.memory_space<vmem>>, %arg4: memref<128x256xf32, #tpu.memory_space<vmem>>, %arg5: memref<1x256xf32, #tpu.memory_space<vmem>>, %arg6: memref<64x1xf32, #tpu.memory_space<vmem>>, %arg7: memref<1x1xf32, #tpu.memory_space<vmem>>, %arg8: memref<8x1xf32, #tpu.memory_space<vmem>>, %arg9: memref<8x8x256xf32, #tpu.memory_space<vmem>>) attributes {dimension_semantics = [], scalar_prefetch = 0 : i64, scratch_operands = 1 : i64, tpu.core_type = #tpu.core_type<tc>} {
    %c0 = arith.constant 0 : index
    %c0_0 = arith.constant 0 : index
    %c0_1 = arith.constant 0 : index
    %0 = vector.load %arg0[%c0, %c0_0, %c0_1] : memref<8x8x1xf32, #tpu.memory_space<vmem>>, vector<8x8x1xf32>
    %c0_2 = arith.constant 0 : index
    %c0_3 = arith.constant 0 : index
    %1 = vector.load %arg1[%c0_2, %c0_3] : memref<1x256xf32, #tpu.memory_space<vmem>>, vector<1x256xf32>
    %2 = vector.shape_cast %1 : vector<1x256xf32> to vector<1x1x256xf32>
    %3 = vector.broadcast %0 : vector<8x8x1xf32> to vector<8x8x256xf32>
    %4 = vector.broadcast %2 : vector<1x1x256xf32> to vector<8x8x256xf32>
    %5 = arith.mulf %3, %4 : vector<8x8x256xf32>
    %c0_4 = arith.constant 0 : index
    %c0_5 = arith.constant 0 : index
    %6 = vector.load %arg3[%c0_4, %c0_5] : memref<1x256xf32, #tpu.memory_space<vmem>>, vector<1x256xf32>
    %7 = vector.shape_cast %6 : vector<1x256xf32> to vector<1x1x256xf32>
    %8 = vector.broadcast %7 : vector<1x1x256xf32> to vector<8x8x256xf32>
    %9 = arith.addf %5, %8 : vector<8x8x256xf32>
    %c0_6 = arith.constant 0 : index
    %c0_7 = arith.constant 0 : index
    %c0_8 = arith.constant 0 : index
    %10 = vector.load %arg9[%c0_6, %c0_7, %c0_8] : memref<8x8x256xf32, #tpu.memory_space<vmem>>, vector<8x8x256xf32>
    tpu.vector_store %arg9[%c0_6, %c0_7, %c0_8], %9 {strides = array<i32>} : memref<8x8x256xf32, #tpu.memory_space<vmem>>, vector<8x8x256xf32>,
    %c0_9 = arith.constant 0 : index
    %c0_10 = arith.constant 0 : index
    %11 = vector.load %arg2[%c0_9, %c0_10] : memref<64x256xf32, #tpu.memory_space<vmem>>, vector<64x256xf32>
    %c0_11 = arith.constant 0 : index
    %c0_12 = arith.constant 0 : index
    %12 = vector.load %arg4[%c0_11, %c0_12] : memref<128x256xf32, #tpu.memory_space<vmem>>, vector<128x256xf32>
    %c0_13 = arith.constant 0 : index
    %c0_14 = arith.constant 0 : index
    %13 = vector.load %arg5[%c0_13, %c0_14] : memref<1x256xf32, #tpu.memory_space<vmem>>, vector<1x256xf32>
    %14 = vector.shape_cast %13 : vector<1x256xf32> to vector<1x256xf32>
    %15 = vector.broadcast %14 : vector<1x256xf32> to vector<8x256xf32>
    %cst = arith.constant 0.000000e+00 : f32
    %16 = vector.broadcast %cst : f32 to vector<8x64xf32>
    %c0_i32 = arith.constant 0 : i32
    %17 = arith.index_cast %c0_i32 : i32 to index
    %c0_15 = arith.constant 0 : index
    %c0_16 = arith.constant 0 : index
    %18 = vector.load %arg9[%17, %c0_15, %c0_16] : memref<8x8x256xf32, #tpu.memory_space<vmem>>, vector<1x8x256xf32>
    %19 = vector.shape_cast %18 : vector<1x8x256xf32> to vector<8x256xf32>
    %cst_17 = arith.constant dense<0.000000e+00> : vector<8x256xf32>
    %20 = tpu.matmul %16, %11, %cst_17 {dimension_numbers = #tpu.dot_dimension_numbers<[1], [0], [0], [1], [0, 0, 1, 1], [], []>} : vector<8x64xf32>, vector<64x256xf32>, vector<8x256xf32> -> vector<8x256xf32>
    %21 = arith.addf %19, %20 : vector<8x256xf32>
    %22 = vector.extract_strided_slice %21 {offsets = [0, 0], sizes = [8, 192], strides = [1, 1]} : vector<8x256xf32> to vector<8x192xf32>
    %23 = arith.negf %22 : vector<8x192xf32>
    %24 = math.exp %23 : vector<8x192xf32>
    %cst_18 = arith.constant 1.000000e+00 : f32
    %25 = vector.broadcast %cst_18 : f32 to vector<8x192xf32>
    %26 = arith.addf %25, %24 : vector<8x192xf32>
    %27 = arith.divf %25, %26 : vector<8x192xf32>
    %28 = vector.extract_strided_slice %21 {offsets = [0, 192], sizes = [8, 64], strides = [1, 1]} : vector<8x256xf32> to vector<8x64xf32>
    %29 = math.tanh %28 : vector<8x64xf32>
    %30 = vector.extract_strided_slice %27 {offsets = [0, 64], sizes = [8, 64], strides = [1, 1]} : vector<8x192xf32> to vector<8x64xf32>
    %31 = arith.mulf %30, %16 : vector<8x64xf32>
    %32 = vector.extract_strided_slice %27 {offsets = [0, 0], sizes = [8, 64], strides = [1, 1]} : vector<8x192xf32> to vector<8x64xf32>
    %33 = arith.mulf %32, %29 : vector<8x64xf32>
    %34 = arith.addf %31, %33 : vector<8x64xf32>
    %35 = vector.extract_strided_slice %27 {offsets = [0, 128], sizes = [8, 64], strides = [1, 1]} : vector<8x192xf32> to vector<8x64xf32>
    %36 = math.tanh %34 : vector<8x64xf32>
    %37 = arith.mulf %35, %36 : vector<8x64xf32>
    %38 = tpu.concatenate %37, %16 in 1 : vector<8x64xf32>, vector<8x64xf32> -> vector<8x128xf32>
    %cst_19 = arith.constant dense<0.000000e+00> : vector<8x256xf32>
    %39 = tpu.matmul %38, %12, %cst_19 {dimension_numbers = #tpu.dot_dimension_numbers<[1], [0], [0], [1], [0, 0, 1, 1], [], []>} : vector<8x128xf32>, vector<128x256xf32>, vector<8x256xf32> -> vector<8x256xf32>
    %40 = arith.addf %39, %15 : vector<8x256xf32>
    %41 = vector.extract_strided_slice %40 {offsets = [0, 0], sizes = [8, 192], strides = [1, 1]} : vector<8x256xf32> to vector<8x192xf32>
    %42 = arith.negf %41 : vector<8x192xf32>
    %43 = math.exp %42 : vector<8x192xf32>
    %cst_20 = arith.constant 1.000000e+00 : f32
    %44 = vector.broadcast %cst_20 : f32 to vector<8x192xf32>
    %45 = arith.addf %44, %43 : vector<8x192xf32>
    %46 = arith.divf %44, %45 : vector<8x192xf32>
    %47 = vector.extract_strided_slice %40 {offsets = [0, 192], sizes = [8, 64], strides = [1, 1]} : vector<8x256xf32> to vector<8x64xf32>
    %48 = math.tanh %47 : vector<8x64xf32>
    %49 = vector.extract_strided_slice %46 {offsets = [0, 64], sizes = [8, 64], strides = [1, 1]} : vector<8x192xf32> to vector<8x64xf32>
    %50 = arith.mulf %49, %16 : vector<8x64xf32>
    %51 = vector.extract_strided_slice %46 {offsets = [0, 0], sizes = [8, 64], strides = [1, 1]} : vector<8x192xf32> to vector<8x64xf32>
    %52 = arith.mulf %51, %48 : vector<8x64xf32>
    %53 = arith.addf %50, %52 : vector<8x64xf32>
    %54 = vector.extract_strided_slice %46 {offsets = [0, 128], sizes = [8, 64], strides = [1, 1]} : vector<8x192xf32> to vector<8x64xf32>
    %55 = math.tanh %53 : vector<8x64xf32>
    %56 = arith.mulf %54, %55 : vector<8x64xf32>
    %c1_i32 = arith.constant 1 : i32
    %57 = arith.index_cast %c1_i32 : i32 to index
    %c0_21 = arith.constant 0 : index
    %c0_22 = arith.constant 0 : index
    %58 = vector.load %arg9[%57, %c0_21, %c0_22] : memref<8x8x256xf32, #tpu.memory_space<vmem>>, vector<1x8x256xf32>
    %59 = vector.shape_cast %58 : vector<1x8x256xf32> to vector<8x256xf32>
    %cst_23 = arith.constant dense<0.000000e+00> : vector<8x256xf32>
    %60 = tpu.matmul %37, %11, %cst_23 {dimension_numbers = #tpu.dot_dimension_numbers<[1], [0], [0], [1], [0, 0, 1, 1], [], []>} : vector<8x64xf32>, vector<64x256xf32>, vector<8x256xf32> -> vector<8x256xf32>
    %61 = arith.addf %59, %60 : vector<8x256xf32>
    %62 = vector.extract_strided_slice %61 {offsets = [0, 0], sizes = [8, 192], strides = [1, 1]} : vector<8x256xf32> to vector<8x192xf32>
    %63 = arith.negf %62 : vector<8x192xf32>
    %64 = math.exp %63 : vector<8x192xf32>
    %cst_24 = arith.constant 1.000000e+00 : f32
    %65 = vector.broadcast %cst_24 : f32 to vector<8x192xf32>
    %66 = arith.addf %65, %64 : vector<8x192xf32>
    %67 = arith.divf %65, %66 : vector<8x192xf32>
    %68 = vector.extract_strided_slice %61 {offsets = [0, 192], sizes = [8, 64], strides = [1, 1]} : vector<8x256xf32> to vector<8x64xf32>
    %69 = math.tanh %68 : vector<8x64xf32>
    %70 = vector.extract_strided_slice %67 {offsets = [0, 64], sizes = [8, 64], strides = [1, 1]} : vector<8x192xf32> to vector<8x64xf32>
    %71 = arith.mulf %70, %34 : vector<8x64xf32>
    %72 = vector.extract_strided_slice %67 {offsets = [0, 0], sizes = [8, 64], strides = [1, 1]} : vector<8x192xf32> to vector<8x64xf32>
    %73 = arith.mulf %72, %69 : vector<8x64xf32>
    %74 = arith.addf %71, %73 : vector<8x64xf32>
    %75 = vector.extract_strided_slice %67 {offsets = [0, 128], sizes = [8, 64], strides = [1, 1]} : vector<8x192xf32> to vector<8x64xf32>
    %76 = math.tanh %74 : vector<8x64xf32>
    %77 = arith.mulf %75, %76 : vector<8x64xf32>
    %78 = tpu.concatenate %77, %56 in 1 : vector<8x64xf32>, vector<8x64xf32> -> vector<8x128xf32>
    %cst_25 = arith.constant dense<0.000000e+00> : vector<8x256xf32>
    %79 = tpu.matmul %78, %12, %cst_25 {dimension_numbers = #tpu.dot_dimension_numbers<[1], [0], [0], [1], [0, 0, 1, 1], [], []>} : vector<8x128xf32>, vector<128x256xf32>, vector<8x256xf32> -> vector<8x256xf32>
    %80 = arith.addf %79, %15 : vector<8x256xf32>
    %81 = vector.extract_strided_slice %80 {offsets = [0, 0], sizes = [8, 192], strides = [1, 1]} : vector<8x256xf32> to vector<8x192xf32>
    %82 = arith.negf %81 : vector<8x192xf32>
    %83 = math.exp %82 : vector<8x192xf32>
    %cst_26 = arith.constant 1.000000e+00 : f32
    %84 = vector.broadcast %cst_26 : f32 to vector<8x192xf32>
    %85 = arith.addf %84, %83 : vector<8x192xf32>
    %86 = arith.divf %84, %85 : vector<8x192xf32>
    %87 = vector.extract_strided_slice %80 {offsets = [0, 192], sizes = [8, 64], strides = [1, 1]} : vector<8x256xf32> to vector<8x64xf32>
    %88 = math.tanh %87 : vector<8x64xf32>
    %89 = vector.extract_strided_slice %86 {offsets = [0, 64], sizes = [8, 64], strides = [1, 1]} : vector<8x192xf32> to vector<8x64xf32>
    %90 = arith.mulf %89, %53 : vector<8x64xf32>
    %91 = vector.extract_strided_slice %86 {offsets = [0, 0], sizes = [8, 64], strides = [1, 1]} : vector<8x192xf32> to vector<8x64xf32>
    %92 = arith.mulf %91, %88 : vector<8x64xf32>
    %93 = arith.addf %90, %92 : vector<8x64xf32>
    %94 = vector.extract_strided_slice %86 {offsets = [0, 128], sizes = [8, 64], strides = [1, 1]} : vector<8x192xf32> to vector<8x64xf32>
    %95 = math.tanh %93 : vector<8x64xf32>
    %96 = arith.mulf %94, %95 : vector<8x64xf32>
    %c2_i32 = arith.constant 2 : i32
    %97 = arith.index_cast %c2_i32 : i32 to index
    %c0_27 = arith.constant 0 : index
    %c0_28 = arith.constant 0 : index
    %98 = vector.load %arg9[%97, %c0_27, %c0_28] : memref<8x8x256xf32, #tpu.memory_space<vmem>>, vector<1x8x256xf32>
    %99 = vector.shape_cast %98 : vector<1x8x256xf32> to vector<8x256xf32>
    %cst_29 = arith.constant dense<0.000000e+00> : vector<8x256xf32>
    %100 = tpu.matmul %77, %11, %cst_29 {dimension_numbers = #tpu.dot_dimension_numbers<[1], [0], [0], [1], [0, 0, 1, 1], [], []>} : vector<8x64xf32>, vector<64x256xf32>, vector<8x256xf32> -> vector<8x256xf32>
    %101 = arith.addf %99, %100 : vector<8x256xf32>
    %102 = vector.extract_strided_slice %101 {offsets = [0, 0], sizes = [8, 192], strides = [1, 1]} : vector<8x256xf32> to vector<8x192xf32>
    %103 = arith.negf %102 : vector<8x192xf32>
    %104 = math.exp %103 : vector<8x192xf32>
    %cst_30 = arith.constant 1.000000e+00 : f32
    %105 = vector.broadcast %cst_30 : f32 to vector<8x192xf32>
    %106 = arith.addf %105, %104 : vector<8x192xf32>
    %107 = arith.divf %105, %106 : vector<8x192xf32>
    %108 = vector.extract_strided_slice %101 {offsets = [0, 192], sizes = [8, 64], strides = [1, 1]} : vector<8x256xf32> to vector<8x64xf32>
    %109 = math.tanh %108 : vector<8x64xf32>
    %110 = vector.extract_strided_slice %107 {offsets = [0, 64], sizes = [8, 64], strides = [1, 1]} : vector<8x192xf32> to vector<8x64xf32>
    %111 = arith.mulf %110, %74 : vector<8x64xf32>
    %112 = vector.extract_strided_slice %107 {offsets = [0, 0], sizes = [8, 64], strides = [1, 1]} : vector<8x192xf32> to vector<8x64xf32>
    %113 = arith.mulf %112, %109 : vector<8x64xf32>
    %114 = arith.addf %111, %113 : vector<8x64xf32>
    %115 = vector.extract_strided_slice %107 {offsets = [0, 128], sizes = [8, 64], strides = [1, 1]} : vector<8x192xf32> to vector<8x64xf32>
    %116 = math.tanh %114 : vector<8x64xf32>
    %117 = arith.mulf %115, %116 : vector<8x64xf32>
    %118 = tpu.concatenate %117, %96 in 1 : vector<8x64xf32>, vector<8x64xf32> -> vector<8x128xf32>
    %cst_31 = arith.constant dense<0.000000e+00> : vector<8x256xf32>
    %119 = tpu.matmul %118, %12, %cst_31 {dimension_numbers = #tpu.dot_dimension_numbers<[1], [0], [0], [1], [0, 0, 1, 1], [], []>} : vector<8x128xf32>, vector<128x256xf32>, vector<8x256xf32> -> vector<8x256xf32>
    %120 = arith.addf %119, %15 : vector<8x256xf32>
    %121 = vector.extract_strided_slice %120 {offsets = [0, 0], sizes = [8, 192], strides = [1, 1]} : vector<8x256xf32> to vector<8x192xf32>
    %122 = arith.negf %121 : vector<8x192xf32>
    %123 = math.exp %122 : vector<8x192xf32>
    %cst_32 = arith.constant 1.000000e+00 : f32
    %124 = vector.broadcast %cst_32 : f32 to vector<8x192xf32>
    %125 = arith.addf %124, %123 : vector<8x192xf32>
    %126 = arith.divf %124, %125 : vector<8x192xf32>
    %127 = vector.extract_strided_slice %120 {offsets = [0, 192], sizes = [8, 64], strides = [1, 1]} : vector<8x256xf32> to vector<8x64xf32>
    %128 = math.tanh %127 : vector<8x64xf32>
    %129 = vector.extract_strided_slice %126 {offsets = [0, 64], sizes = [8, 64], strides = [1, 1]} : vector<8x192xf32> to vector<8x64xf32>
    %130 = arith.mulf %129, %93 : vector<8x64xf32>
    %131 = vector.extract_strided_slice %126 {offsets = [0, 0], sizes = [8, 64], strides = [1, 1]} : vector<8x192xf32> to vector<8x64xf32>
    %132 = arith.mulf %131, %128 : vector<8x64xf32>
    %133 = arith.addf %130, %132 : vector<8x64xf32>
    %134 = vector.extract_strided_slice %126 {offsets = [0, 128], sizes = [8, 64], strides = [1, 1]} : vector<8x192xf32> to vector<8x64xf32>
    %135 = math.tanh %133 : vector<8x64xf32>
    %136 = arith.mulf %134, %135 : vector<8x64xf32>
    %c3_i32 = arith.constant 3 : i32
    %137 = arith.index_cast %c3_i32 : i32 to index
    %c0_33 = arith.constant 0 : index
    %c0_34 = arith.constant 0 : index
    %138 = vector.load %arg9[%137, %c0_33, %c0_34] : memref<8x8x256xf32, #tpu.memory_space<vmem>>, vector<1x8x256xf32>
    %139 = vector.shape_cast %138 : vector<1x8x256xf32> to vector<8x256xf32>
    %cst_35 = arith.constant dense<0.000000e+00> : vector<8x256xf32>
    %140 = tpu.matmul %117, %11, %cst_35 {dimension_numbers = #tpu.dot_dimension_numbers<[1], [0], [0], [1], [0, 0, 1, 1], [], []>} : vector<8x64xf32>, vector<64x256xf32>, vector<8x256xf32> -> vector<8x256xf32>
    %141 = arith.addf %139, %140 : vector<8x256xf32>
    %142 = vector.extract_strided_slice %141 {offsets = [0, 0], sizes = [8, 192], strides = [1, 1]} : vector<8x256xf32> to vector<8x192xf32>
    %143 = arith.negf %142 : vector<8x192xf32>
    %144 = math.exp %143 : vector<8x192xf32>
    %cst_36 = arith.constant 1.000000e+00 : f32
    %145 = vector.broadcast %cst_36 : f32 to vector<8x192xf32>
    %146 = arith.addf %145, %144 : vector<8x192xf32>
    %147 = arith.divf %145, %146 : vector<8x192xf32>
    %148 = vector.extract_strided_slice %141 {offsets = [0, 192], sizes = [8, 64], strides = [1, 1]} : vector<8x256xf32> to vector<8x64xf32>
    %149 = math.tanh %148 : vector<8x64xf32>
    %150 = vector.extract_strided_slice %147 {offsets = [0, 64], sizes = [8, 64], strides = [1, 1]} : vector<8x192xf32> to vector<8x64xf32>
    %151 = arith.mulf %150, %114 : vector<8x64xf32>
    %152 = vector.extract_strided_slice %147 {offsets = [0, 0], sizes = [8, 64], strides = [1, 1]} : vector<8x192xf32> to vector<8x64xf32>
    %153 = arith.mulf %152, %149 : vector<8x64xf32>
    %154 = arith.addf %151, %153 : vector<8x64xf32>
    %155 = vector.extract_strided_slice %147 {offsets = [0, 128], sizes = [8, 64], strides = [1, 1]} : vector<8x192xf32> to vector<8x64xf32>
    %156 = math.tanh %154 : vector<8x64xf32>
    %157 = arith.mulf %155, %156 : vector<8x64xf32>
    %158 = tpu.concatenate %157, %136 in 1 : vector<8x64xf32>, vector<8x64xf32> -> vector<8x128xf32>
    %cst_37 = arith.constant dense<0.000000e+00> : vector<8x256xf32>
    %159 = tpu.matmul %158, %12, %cst_37 {dimension_numbers = #tpu.dot_dimension_numbers<[1], [0], [0], [1], [0, 0, 1, 1], [], []>} : vector<8x128xf32>, vector<128x256xf32>, vector<8x256xf32> -> vector<8x256xf32>
    %160 = arith.addf %159, %15 : vector<8x256xf32>
    %161 = vector.extract_strided_slice %160 {offsets = [0, 0], sizes = [8, 192], strides = [1, 1]} : vector<8x256xf32> to vector<8x192xf32>
    %162 = arith.negf %161 : vector<8x192xf32>
    %163 = math.exp %162 : vector<8x192xf32>
    %cst_38 = arith.constant 1.000000e+00 : f32
    %164 = vector.broadcast %cst_38 : f32 to vector<8x192xf32>
    %165 = arith.addf %164, %163 : vector<8x192xf32>
    %166 = arith.divf %164, %165 : vector<8x192xf32>
    %167 = vector.extract_strided_slice %160 {offsets = [0, 192], sizes = [8, 64], strides = [1, 1]} : vector<8x256xf32> to vector<8x64xf32>
    %168 = math.tanh %167 : vector<8x64xf32>
    %169 = vector.extract_strided_slice %166 {offsets = [0, 64], sizes = [8, 64], strides = [1, 1]} : vector<8x192xf32> to vector<8x64xf32>
    %170 = arith.mulf %169, %133 : vector<8x64xf32>
    %171 = vector.extract_strided_slice %166 {offsets = [0, 0], sizes = [8, 64], strides = [1, 1]} : vector<8x192xf32> to vector<8x64xf32>
    %172 = arith.mulf %171, %168 : vector<8x64xf32>
    %173 = arith.addf %170, %172 : vector<8x64xf32>
    %174 = vector.extract_strided_slice %166 {offsets = [0, 128], sizes = [8, 64], strides = [1, 1]} : vector<8x192xf32> to vector<8x64xf32>
    %175 = math.tanh %173 : vector<8x64xf32>
    %176 = arith.mulf %174, %175 : vector<8x64xf32>
    %c4_i32 = arith.constant 4 : i32
    %177 = arith.index_cast %c4_i32 : i32 to index
    %c0_39 = arith.constant 0 : index
    %c0_40 = arith.constant 0 : index
    %178 = vector.load %arg9[%177, %c0_39, %c0_40] : memref<8x8x256xf32, #tpu.memory_space<vmem>>, vector<1x8x256xf32>
    %179 = vector.shape_cast %178 : vector<1x8x256xf32> to vector<8x256xf32>
    %cst_41 = arith.constant dense<0.000000e+00> : vector<8x256xf32>
    %180 = tpu.matmul %157, %11, %cst_41 {dimension_numbers = #tpu.dot_dimension_numbers<[1], [0], [0], [1], [0, 0, 1, 1], [], []>} : vector<8x64xf32>, vector<64x256xf32>, vector<8x256xf32> -> vector<8x256xf32>
    %181 = arith.addf %179, %180 : vector<8x256xf32>
    %182 = vector.extract_strided_slice %181 {offsets = [0, 0], sizes = [8, 192], strides = [1, 1]} : vector<8x256xf32> to vector<8x192xf32>
    %183 = arith.negf %182 : vector<8x192xf32>
    %184 = math.exp %183 : vector<8x192xf32>
    %cst_42 = arith.constant 1.000000e+00 : f32
    %185 = vector.broadcast %cst_42 : f32 to vector<8x192xf32>
    %186 = arith.addf %185, %184 : vector<8x192xf32>
    %187 = arith.divf %185, %186 : vector<8x192xf32>
    %188 = vector.extract_strided_slice %181 {offsets = [0, 192], sizes = [8, 64], strides = [1, 1]} : vector<8x256xf32> to vector<8x64xf32>
    %189 = math.tanh %188 : vector<8x64xf32>
    %190 = vector.extract_strided_slice %187 {offsets = [0, 64], sizes = [8, 64], strides = [1, 1]} : vector<8x192xf32> to vector<8x64xf32>
    %191 = arith.mulf %190, %154 : vector<8x64xf32>
    %192 = vector.extract_strided_slice %187 {offsets = [0, 0], sizes = [8, 64], strides = [1, 1]} : vector<8x192xf32> to vector<8x64xf32>
    %193 = arith.mulf %192, %189 : vector<8x64xf32>
    %194 = arith.addf %191, %193 : vector<8x64xf32>
    %195 = vector.extract_strided_slice %187 {offsets = [0, 128], sizes = [8, 64], strides = [1, 1]} : vector<8x192xf32> to vector<8x64xf32>
    %196 = math.tanh %194 : vector<8x64xf32>
    %197 = arith.mulf %195, %196 : vector<8x64xf32>
    %198 = tpu.concatenate %197, %176 in 1 : vector<8x64xf32>, vector<8x64xf32> -> vector<8x128xf32>
    %cst_43 = arith.constant dense<0.000000e+00> : vector<8x256xf32>
    %199 = tpu.matmul %198, %12, %cst_43 {dimension_numbers = #tpu.dot_dimension_numbers<[1], [0], [0], [1], [0, 0, 1, 1], [], []>} : vector<8x128xf32>, vector<128x256xf32>, vector<8x256xf32> -> vector<8x256xf32>
    %200 = arith.addf %199, %15 : vector<8x256xf32>
    %201 = vector.extract_strided_slice %200 {offsets = [0, 0], sizes = [8, 192], strides = [1, 1]} : vector<8x256xf32> to vector<8x192xf32>
    %202 = arith.negf %201 : vector<8x192xf32>
    %203 = math.exp %202 : vector<8x192xf32>
    %cst_44 = arith.constant 1.000000e+00 : f32
    %204 = vector.broadcast %cst_44 : f32 to vector<8x192xf32>
    %205 = arith.addf %204, %203 : vector<8x192xf32>
    %206 = arith.divf %204, %205 : vector<8x192xf32>
    %207 = vector.extract_strided_slice %200 {offsets = [0, 192], sizes = [8, 64], strides = [1, 1]} : vector<8x256xf32> to vector<8x64xf32>
    %208 = math.tanh %207 : vector<8x64xf32>
    %209 = vector.extract_strided_slice %206 {offsets = [0, 64], sizes = [8, 64], strides = [1, 1]} : vector<8x192xf32> to vector<8x64xf32>
    %210 = arith.mulf %209, %173 : vector<8x64xf32>
    %211 = vector.extract_strided_slice %206 {offsets = [0, 0], sizes = [8, 64], strides = [1, 1]} : vector<8x192xf32> to vector<8x64xf32>
    %212 = arith.mulf %211, %208 : vector<8x64xf32>
    %213 = arith.addf %210, %212 : vector<8x64xf32>
    %214 = vector.extract_strided_slice %206 {offsets = [0, 128], sizes = [8, 64], strides = [1, 1]} : vector<8x192xf32> to vector<8x64xf32>
    %215 = math.tanh %213 : vector<8x64xf32>
    %216 = arith.mulf %214, %215 : vector<8x64xf32>
    %c5_i32 = arith.constant 5 : i32
    %217 = arith.index_cast %c5_i32 : i32 to index
    %c0_45 = arith.constant 0 : index
    %c0_46 = arith.constant 0 : index
    %218 = vector.load %arg9[%217, %c0_45, %c0_46] : memref<8x8x256xf32, #tpu.memory_space<vmem>>, vector<1x8x256xf32>
    %219 = vector.shape_cast %218 : vector<1x8x256xf32> to vector<8x256xf32>
    %cst_47 = arith.constant dense<0.000000e+00> : vector<8x256xf32>
    %220 = tpu.matmul %197, %11, %cst_47 {dimension_numbers = #tpu.dot_dimension_numbers<[1], [0], [0], [1], [0, 0, 1, 1], [], []>} : vector<8x64xf32>, vector<64x256xf32>, vector<8x256xf32> -> vector<8x256xf32>
    %221 = arith.addf %219, %220 : vector<8x256xf32>
    %222 = vector.extract_strided_slice %221 {offsets = [0, 0], sizes = [8, 192], strides = [1, 1]} : vector<8x256xf32> to vector<8x192xf32>
    %223 = arith.negf %222 : vector<8x192xf32>
    %224 = math.exp %223 : vector<8x192xf32>
    %cst_48 = arith.constant 1.000000e+00 : f32
    %225 = vector.broadcast %cst_48 : f32 to vector<8x192xf32>
    %226 = arith.addf %225, %224 : vector<8x192xf32>
    %227 = arith.divf %225, %226 : vector<8x192xf32>
    %228 = vector.extract_strided_slice %221 {offsets = [0, 192], sizes = [8, 64], strides = [1, 1]} : vector<8x256xf32> to vector<8x64xf32>
    %229 = math.tanh %228 : vector<8x64xf32>
    %230 = vector.extract_strided_slice %227 {offsets = [0, 64], sizes = [8, 64], strides = [1, 1]} : vector<8x192xf32> to vector<8x64xf32>
    %231 = arith.mulf %230, %194 : vector<8x64xf32>
    %232 = vector.extract_strided_slice %227 {offsets = [0, 0], sizes = [8, 64], strides = [1, 1]} : vector<8x192xf32> to vector<8x64xf32>
    %233 = arith.mulf %232, %229 : vector<8x64xf32>
    %234 = arith.addf %231, %233 : vector<8x64xf32>
    %235 = vector.extract_strided_slice %227 {offsets = [0, 128], sizes = [8, 64], strides = [1, 1]} : vector<8x192xf32> to vector<8x64xf32>
    %236 = math.tanh %234 : vector<8x64xf32>
    %237 = arith.mulf %235, %236 : vector<8x64xf32>
    %238 = tpu.concatenate %237, %216 in 1 : vector<8x64xf32>, vector<8x64xf32> -> vector<8x128xf32>
    %cst_49 = arith.constant dense<0.000000e+00> : vector<8x256xf32>
    %239 = tpu.matmul %238, %12, %cst_49 {dimension_numbers = #tpu.dot_dimension_numbers<[1], [0], [0], [1], [0, 0, 1, 1], [], []>} : vector<8x128xf32>, vector<128x256xf32>, vector<8x256xf32> -> vector<8x256xf32>
    %240 = arith.addf %239, %15 : vector<8x256xf32>
    %241 = vector.extract_strided_slice %240 {offsets = [0, 0], sizes = [8, 192], strides = [1, 1]} : vector<8x256xf32> to vector<8x192xf32>
    %242 = arith.negf %241 : vector<8x192xf32>
    %243 = math.exp %242 : vector<8x192xf32>
    %cst_50 = arith.constant 1.000000e+00 : f32
    %244 = vector.broadcast %cst_50 : f32 to vector<8x192xf32>
    %245 = arith.addf %244, %243 : vector<8x192xf32>
    %246 = arith.divf %244, %245 : vector<8x192xf32>
    %247 = vector.extract_strided_slice %240 {offsets = [0, 192], sizes = [8, 64], strides = [1, 1]} : vector<8x256xf32> to vector<8x64xf32>
    %248 = math.tanh %247 : vector<8x64xf32>
    %249 = vector.extract_strided_slice %246 {offsets = [0, 64], sizes = [8, 64], strides = [1, 1]} : vector<8x192xf32> to vector<8x64xf32>
    %250 = arith.mulf %249, %213 : vector<8x64xf32>
    %251 = vector.extract_strided_slice %246 {offsets = [0, 0], sizes = [8, 64], strides = [1, 1]} : vector<8x192xf32> to vector<8x64xf32>
    %252 = arith.mulf %251, %248 : vector<8x64xf32>
    %253 = arith.addf %250, %252 : vector<8x64xf32>
    %254 = vector.extract_strided_slice %246 {offsets = [0, 128], sizes = [8, 64], strides = [1, 1]} : vector<8x192xf32> to vector<8x64xf32>
    %255 = math.tanh %253 : vector<8x64xf32>
    %256 = arith.mulf %254, %255 : vector<8x64xf32>
    %c6_i32 = arith.constant 6 : i32
    %257 = arith.index_cast %c6_i32 : i32 to index
    %c0_51 = arith.constant 0 : index
    %c0_52 = arith.constant 0 : index
    %258 = vector.load %arg9[%257, %c0_51, %c0_52] : memref<8x8x256xf32, #tpu.memory_space<vmem>>, vector<1x8x256xf32>
    %259 = vector.shape_cast %258 : vector<1x8x256xf32> to vector<8x256xf32>
    %cst_53 = arith.constant dense<0.000000e+00> : vector<8x256xf32>
    %260 = tpu.matmul %237, %11, %cst_53 {dimension_numbers = #tpu.dot_dimension_numbers<[1], [0], [0], [1], [0, 0, 1, 1], [], []>} : vector<8x64xf32>, vector<64x256xf32>, vector<8x256xf32> -> vector<8x256xf32>
    %261 = arith.addf %259, %260 : vector<8x256xf32>
    %262 = vector.extract_strided_slice %261 {offsets = [0, 0], sizes = [8, 192], strides = [1, 1]} : vector<8x256xf32> to vector<8x192xf32>
    %263 = arith.negf %262 : vector<8x192xf32>
    %264 = math.exp %263 : vector<8x192xf32>
    %cst_54 = arith.constant 1.000000e+00 : f32
    %265 = vector.broadcast %cst_54 : f32 to vector<8x192xf32>
    %266 = arith.addf %265, %264 : vector<8x192xf32>
    %267 = arith.divf %265, %266 : vector<8x192xf32>
    %268 = vector.extract_strided_slice %261 {offsets = [0, 192], sizes = [8, 64], strides = [1, 1]} : vector<8x256xf32> to vector<8x64xf32>
    %269 = math.tanh %268 : vector<8x64xf32>
    %270 = vector.extract_strided_slice %267 {offsets = [0, 64], sizes = [8, 64], strides = [1, 1]} : vector<8x192xf32> to vector<8x64xf32>
    %271 = arith.mulf %270, %234 : vector<8x64xf32>
    %272 = vector.extract_strided_slice %267 {offsets = [0, 0], sizes = [8, 64], strides = [1, 1]} : vector<8x192xf32> to vector<8x64xf32>
    %273 = arith.mulf %272, %269 : vector<8x64xf32>
    %274 = arith.addf %271, %273 : vector<8x64xf32>
    %275 = vector.extract_strided_slice %267 {offsets = [0, 128], sizes = [8, 64], strides = [1, 1]} : vector<8x192xf32> to vector<8x64xf32>
    %276 = math.tanh %274 : vector<8x64xf32>
    %277 = arith.mulf %275, %276 : vector<8x64xf32>
    %278 = tpu.concatenate %277, %256 in 1 : vector<8x64xf32>, vector<8x64xf32> -> vector<8x128xf32>
    %cst_55 = arith.constant dense<0.000000e+00> : vector<8x256xf32>
    %279 = tpu.matmul %278, %12, %cst_55 {dimension_numbers = #tpu.dot_dimension_numbers<[1], [0], [0], [1], [0, 0, 1, 1], [], []>} : vector<8x128xf32>, vector<128x256xf32>, vector<8x256xf32> -> vector<8x256xf32>
    %280 = arith.addf %279, %15 : vector<8x256xf32>
    %281 = vector.extract_strided_slice %280 {offsets = [0, 0], sizes = [8, 192], strides = [1, 1]} : vector<8x256xf32> to vector<8x192xf32>
    %282 = arith.negf %281 : vector<8x192xf32>
    %283 = math.exp %282 : vector<8x192xf32>
    %cst_56 = arith.constant 1.000000e+00 : f32
    %284 = vector.broadcast %cst_56 : f32 to vector<8x192xf32>
    %285 = arith.addf %284, %283 : vector<8x192xf32>
    %286 = arith.divf %284, %285 : vector<8x192xf32>
    %287 = vector.extract_strided_slice %280 {offsets = [0, 192], sizes = [8, 64], strides = [1, 1]} : vector<8x256xf32> to vector<8x64xf32>
    %288 = math.tanh %287 : vector<8x64xf32>
    %289 = vector.extract_strided_slice %286 {offsets = [0, 64], sizes = [8, 64], strides = [1, 1]} : vector<8x192xf32> to vector<8x64xf32>
    %290 = arith.mulf %289, %253 : vector<8x64xf32>
    %291 = vector.extract_strided_slice %286 {offsets = [0, 0], sizes = [8, 64], strides = [1, 1]} : vector<8x192xf32> to vector<8x64xf32>
    %292 = arith.mulf %291, %288 : vector<8x64xf32>
    %293 = arith.addf %290, %292 : vector<8x64xf32>
    %294 = vector.extract_strided_slice %286 {offsets = [0, 128], sizes = [8, 64], strides = [1, 1]} : vector<8x192xf32> to vector<8x64xf32>
    %295 = math.tanh %293 : vector<8x64xf32>
    %296 = arith.mulf %294, %295 : vector<8x64xf32>
    %c7_i32 = arith.constant 7 : i32
    %297 = arith.index_cast %c7_i32 : i32 to index
    %c0_57 = arith.constant 0 : index
    %c0_58 = arith.constant 0 : index
    %298 = vector.load %arg9[%297, %c0_57, %c0_58] : memref<8x8x256xf32, #tpu.memory_space<vmem>>, vector<1x8x256xf32>
    %299 = vector.shape_cast %298 : vector<1x8x256xf32> to vector<8x256xf32>
    %cst_59 = arith.constant dense<0.000000e+00> : vector<8x256xf32>
    %300 = tpu.matmul %277, %11, %cst_59 {dimension_numbers = #tpu.dot_dimension_numbers<[1], [0], [0], [1], [0, 0, 1, 1], [], []>} : vector<8x64xf32>, vector<64x256xf32>, vector<8x256xf32> -> vector<8x256xf32>
    %301 = arith.addf %299, %300 : vector<8x256xf32>
    %302 = vector.extract_strided_slice %301 {offsets = [0, 0], sizes = [8, 192], strides = [1, 1]} : vector<8x256xf32> to vector<8x192xf32>
    %303 = arith.negf %302 : vector<8x192xf32>
    %304 = math.exp %303 : vector<8x192xf32>
    %cst_60 = arith.constant 1.000000e+00 : f32
    %305 = vector.broadcast %cst_60 : f32 to vector<8x192xf32>
    %306 = arith.addf %305, %304 : vector<8x192xf32>
    %307 = arith.divf %305, %306 : vector<8x192xf32>
    %308 = vector.extract_strided_slice %301 {offsets = [0, 192], sizes = [8, 64], strides = [1, 1]} : vector<8x256xf32> to vector<8x64xf32>
    %309 = math.tanh %308 : vector<8x64xf32>
    %310 = vector.extract_strided_slice %307 {offsets = [0, 64], sizes = [8, 64], strides = [1, 1]} : vector<8x192xf32> to vector<8x64xf32>
    %311 = arith.mulf %310, %274 : vector<8x64xf32>
    %312 = vector.extract_strided_slice %307 {offsets = [0, 0], sizes = [8, 64], strides = [1, 1]} : vector<8x192xf32> to vector<8x64xf32>
    %313 = arith.mulf %312, %309 : vector<8x64xf32>
    %314 = arith.addf %311, %313 : vector<8x64xf32>
    %315 = vector.extract_strided_slice %307 {offsets = [0, 128], sizes = [8, 64], strides = [1, 1]} : vector<8x192xf32> to vector<8x64xf32>
    %316 = math.tanh %314 : vector<8x64xf32>
    %317 = arith.mulf %315, %316 : vector<8x64xf32>
    %318 = tpu.concatenate %317, %296 in 1 : vector<8x64xf32>, vector<8x64xf32> -> vector<8x128xf32>
    %cst_61 = arith.constant dense<0.000000e+00> : vector<8x256xf32>
    %319 = tpu.matmul %318, %12, %cst_61 {dimension_numbers = #tpu.dot_dimension_numbers<[1], [0], [0], [1], [0, 0, 1, 1], [], []>} : vector<8x128xf32>, vector<128x256xf32>, vector<8x256xf32> -> vector<8x256xf32>
    %320 = arith.addf %319, %15 : vector<8x256xf32>
    %321 = vector.extract_strided_slice %320 {offsets = [0, 0], sizes = [8, 192], strides = [1, 1]} : vector<8x256xf32> to vector<8x192xf32>
    %322 = arith.negf %321 : vector<8x192xf32>
    %323 = math.exp %322 : vector<8x192xf32>
    %cst_62 = arith.constant 1.000000e+00 : f32
    %324 = vector.broadcast %cst_62 : f32 to vector<8x192xf32>
    %325 = arith.addf %324, %323 : vector<8x192xf32>
    %326 = arith.divf %324, %325 : vector<8x192xf32>
    %327 = vector.extract_strided_slice %320 {offsets = [0, 192], sizes = [8, 64], strides = [1, 1]} : vector<8x256xf32> to vector<8x64xf32>
    %328 = math.tanh %327 : vector<8x64xf32>
    %329 = vector.extract_strided_slice %326 {offsets = [0, 64], sizes = [8, 64], strides = [1, 1]} : vector<8x192xf32> to vector<8x64xf32>
    %330 = arith.mulf %329, %293 : vector<8x64xf32>
    %331 = vector.extract_strided_slice %326 {offsets = [0, 0], sizes = [8, 64], strides = [1, 1]} : vector<8x192xf32> to vector<8x64xf32>
    %332 = arith.mulf %331, %328 : vector<8x64xf32>
    %333 = arith.addf %330, %332 : vector<8x64xf32>
    %334 = vector.extract_strided_slice %326 {offsets = [0, 128], sizes = [8, 64], strides = [1, 1]} : vector<8x192xf32> to vector<8x64xf32>
    %335 = math.tanh %333 : vector<8x64xf32>
    %336 = arith.mulf %334, %335 : vector<8x64xf32>
    %c8_i32 = arith.constant 8 : i32
    %c0_63 = arith.constant 0 : index
    %c0_64 = arith.constant 0 : index
    %337 = vector.load %arg6[%c0_63, %c0_64] : memref<64x1xf32, #tpu.memory_space<vmem>>, vector<64x1xf32>
    %cst_65 = arith.constant dense<0.000000e+00> : vector<8x1xf32>
    %338 = tpu.matmul %336, %337, %cst_65 {dimension_numbers = #tpu.dot_dimension_numbers<[1], [0], [0], [1], [0, 0, 1, 1], [], []>} : vector<8x64xf32>, vector<64x1xf32>, vector<8x1xf32> -> vector<8x1xf32>
    %c0_66 = arith.constant 0 : index
    %c0_67 = arith.constant 0 : index
    %339 = vector.load %arg7[%c0_66, %c0_67] : memref<1x1xf32, #tpu.memory_space<vmem>>, vector<1x1xf32>
    %340 = vector.broadcast %339 : vector<1x1xf32> to vector<8x1xf32>
    %341 = arith.addf %338, %340 : vector<8x1xf32>
    %c0_68 = arith.constant 0 : index
    %c0_69 = arith.constant 0 : index
    %342 = vector.load %arg8[%c0_68, %c0_69] : memref<8x1xf32, #tpu.memory_space<vmem>>, vector<8x1xf32>
    tpu.vector_store %arg8[%c0_68, %c0_69], %341 {strides = array<i32>} : memref<8x1xf32, #tpu.memory_space<vmem>>, vector<8x1xf32>,
    return
  }
}

</mosaic_0001>

<llo_original>
// kernel: tpu_custom_call.1
$region0: #{tpu_custom_call.1}
  #allocation0 [shape = 'u32[]', space=smem, size = 0x4, offset = 0x4, fixed_abs, tag = 'smem constant byte address 0x4 - core index']
  #allocation1 [shape = 'u32[144,128]{1,0:T(1,128)}', space=vmem, size = 0x12000, scoped, tag = 'internal scratch']
  #allocation2 [shape = 'f32[8,8,256]{2,1,0:T(8,128)}', space=vmem, size = 0x10000, scoped, tag = 'scratch operand']
  #allocation3 [shape = 'f32[1,1]{1,0:T(1,128)S(1)}', space=vmem, size = 0x200, scoped, tag = 'scoped memory for tpu_custom_call.1']
  %s0 = inlined_call_operand.vmem [shape: f32[8,8,1], index: 0, kind: input, shape index: {}]
  %s1 = inlined_call_operand.vmem [shape: f32[1,256], index: 1, kind: input, shape index: {}]
  %s2 = inlined_call_operand.vmem [shape: f32[64,256], index: 2, kind: input, shape index: {}]
  %s3 = inlined_call_operand.vmem [shape: f32[1,256], index: 3, kind: input, shape index: {}]
  %s4 = inlined_call_operand.hbm [shape: f32[128,256], index: 4, kind: input, shape index: {}]
  %s5 = inlined_call_operand.vmem [shape: f32[1,256], index: 5, kind: input, shape index: {}]
  %s6 = inlined_call_operand.vmem [shape: f32[64,1], index: 6, kind: input, shape index: {}]
  %s7 = inlined_call_operand.<no memory space> [shape: f32[1,1], index: 7, kind: input, shape index: {}]
  %s8 = inlined_call_operand.vmem [shape: f32[8,1], index: 8, kind: output, shape index: {}]
  %s9 = sld [smem:[#allocation0]]
  $region46: #{tpu_custom_call.1} parent=0
    _
  %s11 = ssub.s32 1, %s9
  %s12 = scalar_select 0, %s11, %s9
  %v13 = vstv %s7
  %14 = vst [vmem:[#allocation3] sm:$0x1] %v13
  $region1: #{tpu_custom_call.1} parent=0
    #allocation4 [shape = 'u8[131072]{0}', space=vmem, size = 0x20000, scoped, tag = 'input window, operand 4, single buffered']
    #allocation5 [shape = 's32[1]{0}', space=sflag, size = 0x4, scoped, tag = 'scoped memory for tpu_custom_call.1']
    %15 = vsyncpa [#allocation5], 0
    // Predicated region
    $region2: #{tpu_custom_call.1} parent=1 // pred_check
      _
    $region3: #{tpu_custom_call.1} parent=1 // pred_check_branch
      %17 = sbr.rel (0) target = $region5
    $region4: #{tpu_custom_call.1} parent=1 // pred_region
      _
    $region5: #{tpu_custom_call.1} parent=1 // pred_fallthru
      _
    // Predicated region
    $region6: #{tpu_custom_call.1} parent=1 // pred_check
      _
    $region7: #{tpu_custom_call.1} parent=1 // pred_check_branch
      %19 = sbr.rel (0) target = $region9
    $region8: #{tpu_custom_call.1} parent=1 // pred_region
      _
    $region9: #{tpu_custom_call.1} parent=1 // pred_fallthru
      _
    // Predicated region
    $region10: #{tpu_custom_call.1} parent=1 // pred_check
      _
    $region11: #{tpu_custom_call.1} parent=1 // pred_check_branch
      %21 = sbr.rel (0) target = $region13
    $region12: #{tpu_custom_call.1} parent=1 // pred_region
      _
    $region13: #{tpu_custom_call.1} parent=1 // pred_fallthru
      _
    // Predicated region
    $region14: #{tpu_custom_call.1} parent=1 // pred_check
      _
    $region15: #{tpu_custom_call.1} parent=1 // pred_check_branch
      %23 = sbr.rel (0) target = $region17
    $region16: #{tpu_custom_call.1} parent=1 // pred_region
      _
    $region17: #{tpu_custom_call.1} parent=1 // pred_fallthru
      _
    // Predicated region
    $region18: #{tpu_custom_call.1} parent=1 // pred_check
      _
    $region19: #{tpu_custom_call.1} parent=1 // pred_check_branch
      %25 = sbr.rel (0) target = $region21
    $region20: #{tpu_custom_call.1} parent=1 // pred_region
      %s27 = ssub.s32 4096, 4096
      %28 = vsyncadd [#allocation5], %s27
      %s29 = sshll.u32 [#allocation4], 4
      %s30 = int_to_ptr.vmem [resolvable:$true] %s29
      %35 = dma.hbm_to_vmem [thread:$0]  %s4, 4096, %s30, [#allocation5], 256, 256, 16
    $region21: #{tpu_custom_call.1} parent=1 // pred_fallthru
      _
    // Predicated region
    $region22: #{tpu_custom_call.1} parent=1 // pred_check
      _
    $region23: #{tpu_custom_call.1} parent=1 // pred_check_branch
      %37 = sbr.rel (0) target = $region25
    $region24: #{tpu_custom_call.1} parent=1 // pred_region
      _
    $region25: #{tpu_custom_call.1} parent=1 // pred_fallthru
      _
    // Predicated region
    $region26: #{tpu_custom_call.1} parent=1 // pred_check
      _
    $region27: #{tpu_custom_call.1} parent=1 // pred_check_branch
      %39 = sbr.rel (0) target = $region29
    $region28: #{tpu_custom_call.1} parent=1 // pred_region
      _
    $region29: #{tpu_custom_call.1} parent=1 // pred_fallthru
      _
    // Predicated region
    $region30: #{tpu_custom_call.1} parent=1 // pred_check
      _
    $region31: #{tpu_custom_call.1} parent=1 // pred_check_branch
      %41 = sbr.rel (0) target = $region33
    $region32: #{tpu_custom_call.1} parent=1 // pred_region
      _
    $region33: #{tpu_custom_call.1} parent=1 // pred_fallthru
      _
    // Predicated region
    $region34: #{tpu_custom_call.1} parent=1 // pred_check
      _
    $region35: #{tpu_custom_call.1} parent=1 // pred_check_branch
      %43 = sbr.rel (0) target = $region37
    $region36: #{tpu_custom_call.1} parent=1 // pred_region
      %44 = dma.done [#allocation5], 4096
    $region37: #{tpu_custom_call.1} parent=1 // pred_fallthru
      _
    %v45 = vld [vmem:[%s0] sm:$0xff]
    %v46 = vld [vmem:[%s0 + $0x8] sm:$0xff]
    %v47 = vld [vmem:[%s0 + $0x10] sm:$0xff]
    %v48 = vld [vmem:[%s0 + $0x18] sm:$0xff]
    %v49 = vld [vmem:[%s0 + $0x20] sm:$0xff]
    %v50 = vld [vmem:[%s0 + $0x28] sm:$0xff]
    %v51 = vld [vmem:[%s0 + $0x30] sm:$0xff]
    %v52 = vld [vmem:[%s0 + $0x38] sm:$0xff]
    %v53 = vld [vmem:[%s1] sm:$0x3]
    %55 = vset.pattern.permute.xlu0 0
    %56 = vperm.xlu0 %55, %v45
    %v57 = vpop.permute.xlu0 %56
    %60 = vset.pattern.permute.xlu0 0
    %61 = vperm.xlu0 %60, %v46
    %v62 = vpop.permute.xlu0 %61
    %65 = vset.pattern.permute.xlu0 0
    %66 = vperm.xlu0 %65, %v47
    %v67 = vpop.permute.xlu0 %66
    %70 = vset.pattern.permute.xlu0 0
    %71 = vperm.xlu0 %70, %v48
    %v72 = vpop.permute.xlu0 %71
    %75 = vset.pattern.permute.xlu0 0
    %76 = vperm.xlu0 %75, %v49
    %v77 = vpop.permute.xlu0 %76
    %80 = vset.pattern.permute.xlu0 0
    %81 = vperm.xlu0 %80, %v50
    %v82 = vpop.permute.xlu0 %81
    %85 = vset.pattern.permute.xlu0 0
    %86 = vperm.xlu0 %85, %v51
    %v87 = vpop.permute.xlu0 %86
    %90 = vset.pattern.permute.xlu0 0
    %91 = vperm.xlu0 %90, %v52
    %v92 = vpop.permute.xlu0 %91
    %v95 = vlaneseq
    %v96 = vshrl.u32 %v95, 7
    %v97 = vsub.s32 0, %v96
    %v98 = vrot.slane %v53, %v97
    %v99 = vlaneseq
    %v100 = vshrl.u32 %v99, 7
    %v101 = vsub.s32 1, %v100
    %v102 = vrot.slane %v53, %v101
    %v105 = vmul.f32 %v57, %v98
    %v106 = vmul.f32 %v57, %v102
    %v107 = vmul.f32 %v62, %v98
    %v108 = vmul.f32 %v62, %v102
    %v109 = vmul.f32 %v67, %v98
    %v110 = vmul.f32 %v67, %v102
    %v111 = vmul.f32 %v72, %v98
    %v112 = vmul.f32 %v72, %v102
    %v113 = vmul.f32 %v77, %v98
    %v114 = vmul.f32 %v77, %v102
    %v115 = vmul.f32 %v82, %v98
    %v116 = vmul.f32 %v82, %v102
    %v117 = vmul.f32 %v87, %v98
    %v118 = vmul.f32 %v87, %v102
    %v119 = vmul.f32 %v92, %v98
    %v120 = vmul.f32 %v92, %v102
    %v121 = vld [vmem:[%s3] sm:$0x3]
    %v123 = vlaneseq
    %v124 = vshrl.u32 %v123, 7
    %v125 = vsub.s32 0, %v124
    %v126 = vrot.slane %v121, %v125
    %v127 = vlaneseq
    %v128 = vshrl.u32 %v127, 7
    %v129 = vsub.s32 1, %v128
    %v130 = vrot.slane %v121, %v129
    %v133 = vadd.f32 %v105, %v126
    %v134 = vadd.f32 %v106, %v130
    %v135 = vadd.f32 %v107, %v126
    %v136 = vadd.f32 %v108, %v130
    %v137 = vadd.f32 %v109, %v126
    %v138 = vadd.f32 %v110, %v130
    %v139 = vadd.f32 %v111, %v126
    %v140 = vadd.f32 %v112, %v130
    %v141 = vadd.f32 %v113, %v126
    %v142 = vadd.f32 %v114, %v130
    %v143 = vadd.f32 %v115, %v126
    %v144 = vadd.f32 %v116, %v130
    %v145 = vadd.f32 %v117, %v126
    %v146 = vadd.f32 %v118, %v130
    %v147 = vadd.f32 %v119, %v126
    %v148 = vadd.f32 %v120, %v130
    %149 = vst [vmem:[#allocation2] sm:$0xff] %v133
    %150 = vst [vmem:[#allocation2 + $0x8] sm:$0xff] %v134
    %151 = vst [vmem:[#allocation2 + $0x10] sm:$0xff] %v135
    %152 = vst [vmem:[#allocation2 + $0x18] sm:$0xff] %v136
    %153 = vst [vmem:[#allocation2 + $0x20] sm:$0xff] %v137
    %154 = vst [vmem:[#allocation2 + $0x28] sm:$0xff] %v138
    %155 = vst [vmem:[#allocation2 + $0x30] sm:$0xff] %v139
    %156 = vst [vmem:[#allocation2 + $0x38] sm:$0xff] %v140
    %157 = vst [vmem:[#allocation2 + $0x40] sm:$0xff] %v141
    %158 = vst [vmem:[#allocation2 + $0x48] sm:$0xff] %v142
    %159 = vst [vmem:[#allocation2 + $0x50] sm:$0xff] %v143
    %160 = vst [vmem:[#allocation2 + $0x58] sm:$0xff] %v144
    %161 = vst [vmem:[#allocation2 + $0x60] sm:$0xff] %v145
    %162 = vst [vmem:[#allocation2 + $0x68] sm:$0xff] %v146
    %163 = vst [vmem:[#allocation2 + $0x70] sm:$0xff] %v147
    %164 = vst [vmem:[#allocation2 + $0x78] sm:$0xff] %v148
    %v165 = vld [vmem:[%s2] sm:$0xff]
    %v166 = vld [vmem:[%s2 + $0x8] sm:$0xff]
    %v167 = vld [vmem:[%s2 + $0x10] sm:$0xff]
    %v168 = vld [vmem:[%s2 + $0x18] sm:$0xff]
    %v169 = vld [vmem:[%s2 + $0x20] sm:$0xff]
    %v170 = vld [vmem:[%s2 + $0x28] sm:$0xff]
    %v171 = vld [vmem:[%s2 + $0x30] sm:$0xff]
    %v172 = vld [vmem:[%s2 + $0x38] sm:$0xff]
    %v173 = vld [vmem:[%s2 + $0x40] sm:$0xff]
    %v174 = vld [vmem:[%s2 + $0x48] sm:$0xff]
    %v175 = vld [vmem:[%s2 + $0x50] sm:$0xff]
    %v176 = vld [vmem:[%s2 + $0x58] sm:$0xff]
    %v177 = vld [vmem:[%s2 + $0x60] sm:$0xff]
    %v178 = vld [vmem:[%s2 + $0x68] sm:$0xff]
    %v179 = vld [vmem:[%s2 + $0x70] sm:$0xff]
    %v180 = vld [vmem:[%s2 + $0x78] sm:$0xff]
    %v181 = vld [vmem:[#allocation4] sm:$0xff]
    %v182 = vld [vmem:[#allocation4 + $0x8] sm:$0xff]
    %v183 = vld [vmem:[#allocation4 + $0x10] sm:$0xff]
    %v184 = vld [vmem:[#allocation4 + $0x18] sm:$0xff]
    %v185 = vld [vmem:[#allocation4 + $0x20] sm:$0xff]
    %v186 = vld [vmem:[#allocation4 + $0x28] sm:$0xff]
    %v187 = vld [vmem:[#allocation4 + $0x30] sm:$0xff]
    %v188 = vld [vmem:[#allocation4 + $0x38] sm:$0xff]
    %v189 = vld [vmem:[#allocation4 + $0x40] sm:$0xff]
    %v190 = vld [vmem:[#allocation4 + $0x48] sm:$0xff]
    %v191 = vld [vmem:[#allocation4 + $0x50] sm:$0xff]
    %v192 = vld [vmem:[#allocation4 + $0x58] sm:$0xff]
    %v193 = vld [vmem:[#allocation4 + $0x60] sm:$0xff]
    %v194 = vld [vmem:[#allocation4 + $0x68] sm:$0xff]
    %v195 = vld [vmem:[#allocation4 + $0x70] sm:$0xff]
    %v196 = vld [vmem:[#allocation4 + $0x78] sm:$0xff]
    %v197 = vld [vmem:[#allocation4 + $0x80] sm:$0xff]
    %v198 = vld [vmem:[#allocation4 + $0x88] sm:$0xff]
    %v199 = vld [vmem:[#allocation4 + $0x90] sm:$0xff]
    %v200 = vld [vmem:[#allocation4 + $0x98] sm:$0xff]
    %v201 = vld [vmem:[#allocation4 + $0xa0] sm:$0xff]
    %v202 = vld [vmem:[#allocation4 + $0xa8] sm:$0xff]
    %v203 = vld [vmem:[#allocation4 + $0xb0] sm:$0xff]
    %v204 = vld [vmem:[#allocation4 + $0xb8] sm:$0xff]
    %v205 = vld [vmem:[#allocation4 + $0xc0] sm:$0xff]
    %v206 = vld [vmem:[#allocation4 + $0xc8] sm:$0xff]
    %v207 = vld [vmem:[#allocation4 + $0xd0] sm:$0xff]
    %v208 = vld [vmem:[#allocation4 + $0xd8] sm:$0xff]
    %v209 = vld [vmem:[#allocation4 + $0xe0] sm:$0xff]
    %v210 = vld [vmem:[#allocation4 + $0xe8] sm:$0xff]
    %v211 = vld [vmem:[#allocation4 + $0xf0] sm:$0xff]
    %v212 = vld [vmem:[#allocation4 + $0xf8] sm:$0xff]
    %v213 = vld [vmem:[%s5] sm:$0x3]
    %v215 = vlaneseq
    %v216 = vshrl.u32 %v215, 7
    %v217 = vsub.s32 0, %v216
    %v218 = vrot.slane %v213, %v217
    %v219 = vlaneseq
    %v220 = vshrl.u32 %v219, 7
    %v221 = vsub.s32 1, %v220
    %v222 = vrot.slane %v213, %v221
    %v225 = vld [vmem:[#allocation2] sm:$0xff]
    %v226 = vld [vmem:[#allocation2 + $0x8] sm:$0xff]
    %vm227 = vcmask 523264
    %v229 = vsel %vm227, 0.0, 0
    %231 = vmatprep.subr.mxu0 %v166
    %232 = vmatpush1.msra.mxu0 %v165
    %233 = vmatprep.subr.mxu0 %v168
    %234 = vmatpush1.msra.mxu0 %v167
    %235 = vmatprep.subr.mxu0 %v170
    %236 = vmatpush1.msra.mxu0 %v169
    %237 = vmatprep.subr.mxu0 %v172
    %238 = vmatpush1.msra.mxu0 %v171
    %239 = vmatprep.subr.mxu0 %v174
    %240 = vmatpush1.msra.mxu0 %v173
    %241 = vmatprep.subr.mxu0 %v176
    %242 = vmatpush1.msra.mxu0 %v175
    %243 = vmatprep.subr.mxu0 %v178
    %244 = vmatpush1.msra.mxu0 %v177
    %245 = vmatprep.subr.mxu0 %v180
    %246 = vmatpush1.msra.mxu0 %v179
    %247 = vmatprep.subr.mxu0 0.0
    %248 = vmatpush1.msra.mxu0 0.0
    %249 = vmatprep.subr.mxu0 0.0
    %250 = vmatpush1.msra.mxu0 0.0
    %251 = vmatprep.subr.mxu0 0.0
    %252 = vmatpush1.msra.mxu0 0.0
    %253 = vmatprep.subr.mxu0 0.0
    %254 = vmatpush1.msra.mxu0 0.0
    %255 = vmatprep.subr.mxu0 0.0
    %256 = vmatpush1.msra.mxu0 0.0
    %257 = vmatprep.subr.mxu0 0.0
    %258 = vmatpush1.msra.mxu0 0.0
    %259 = vmatprep.subr.mxu0 0.0
    %260 = vmatpush1.msra.mxu0 0.0
    %261 = vmatprep.subr.mxu0 0.0
    %262 = vmatpush1.msra.mxu0 0.0
    %263 = vmatprep.subr.mxu0 0.0
    %264 = vmatpush1.msra.mxu0 0.0
    %265 = vmatprep.subr.mxu0 0.0
    %266 = vmatpush1.msra.mxu0 0.0
    %267 = vmatprep.subr.mxu0 0.0
    %268 = vmatpush1.msra.mxu0 0.0
    %269 = vmatprep.subr.mxu0 0.0
    %270 = vmatpush1.msra.mxu0 0.0
    %271 = vmatprep.subr.mxu0 0.0
    %272 = vmatpush1.msra.mxu0 0.0
    %273 = vmatprep.subr.mxu0 0.0
    %274 = vmatpush1.msra.mxu0 0.0
    %275 = vmatprep.subr.mxu0 0.0
    %276 = vmatpush1.msra.mxu0 0.0
    %277 = vmatprep.subr.mxu0 0.0
    %278 = vmatpush1.msra.mxu0 0.0
    %279 = vmatprep.subr.mxu0 0.0
    %280 = vmatpush1.msra.mxu0 0.0
    %281 = vmatprep.subr.mxu0 0.0
    %282 = vmatpush1.msra.mxu0 0.0
    %283 = vmatprep.subr.mxu0 0.0
    %284 = vmatpush1.msra.mxu0 0.0
    %285 = vmatprep.subr.mxu0 0.0
    %286 = vmatpush1.msra.mxu0 0.0
    %287 = vmatprep.subr.mxu0 0.0
    %288 = vmatpush1.msra.mxu0 0.0
    %289 = vmatprep.subr.mxu0 0.0
    %290 = vmatpush1.msra.mxu0 0.0
    %291 = vmatprep.subr.mxu0 0.0
    %292 = vmatpush1.msra.mxu0 0.0
    %293 = vmatprep.subr.mxu0 0.0
    %294 = vmatpush1.msra.mxu0 0.0
    %295 = vmatprep.mubr.f32.mxu0 0.0
    %296 = vmatmul.mubr.f32.gmra.mrb[0].mxu0 %v229
    %v297 = vpop.f32.mrb[0].mxu0
    %v298 = vadd.f32 0.0, %v297
    %v299 = vpop.f32.mrb[0].mxu0
    %v300 = vadd.f32 0.0, %v299
    %301 = vdwg.mxu0
    %v302 = vadd.f32 %v225, %v298
    %v303 = vadd.f32 %v226, %v300
    %v304 = vxor.u32 %v302, 2147483648
    %v305 = vxor.u32 %v303, 2147483648
    %v306 = vmul.f32 %v304, 1.442695
    %v307 = vpow.pop %v306
    %v308 = vmul.f32 %v305, 1.442695
    %v309 = vpow.pop %v308
    %v310 = vadd.f32 %v307, 1.0
    %v311 = vadd.f32 %v309, 1.0
    %v312 = vrcp.pop %v310
    %v313 = vmul.f32 1.0, %v312
    %v314 = vrcp.pop %v311
    %v315 = vmul.f32 1.0, %v314
    %v316 = vtanh.pop %v303
    %v317 = vmul.f32 %v313, 0.0
    %319 = vrot.lane.b32.xlu0 %v316, 64
    %v320 = vpop.permute.xlu0 %319
    %v322 = vmul.f32 %v313, %v320
    %324 = vrot.lane.b32.xlu0 %v322, 64
    %v325 = vpop.permute.xlu0 %324
    %v327 = vadd.f32 %v317, %v325
    %v328 = vtanh.pop %v327
    %330 = vrot.lane.b32.xlu0 %v328, 64
    %v331 = vpop.permute.xlu0 %330
    %v333 = vmul.f32 %v315, %v331
    %v334 = vsel %vm227, %v333, 0.0
    %335 = vmatprep.subr.mxu0 %v182
    %336 = vmatpush1.msra.mxu0 %v181
    %337 = vmatprep.subr.mxu0 %v184
    %338 = vmatpush1.msra.mxu0 %v183
    %339 = vmatprep.subr.mxu0 %v186
    %340 = vmatpush1.msra.mxu0 %v185
    %341 = vmatprep.subr.mxu0 %v188
    %342 = vmatpush1.msra.mxu0 %v187
    %343 = vmatprep.subr.mxu0 %v190
    %344 = vmatpush1.msra.mxu0 %v189
    %345 = vmatprep.subr.mxu0 %v192
    %346 = vmatpush1.msra.mxu0 %v191
    %347 = vmatprep.subr.mxu0 %v194
    %348 = vmatpush1.msra.mxu0 %v193
    %349 = vmatprep.subr.mxu0 %v196
    %350 = vmatpush1.msra.mxu0 %v195
    %351 = vmatprep.subr.mxu0 %v198
    %352 = vmatpush1.msra.mxu0 %v197
    %353 = vmatprep.subr.mxu0 %v200
    %354 = vmatpush1.msra.mxu0 %v199
    %355 = vmatprep.subr.mxu0 %v202
    %356 = vmatpush1.msra.mxu0 %v201
    %357 = vmatprep.subr.mxu0 %v204
    %358 = vmatpush1.msra.mxu0 %v203
    %359 = vmatprep.subr.mxu0 %v206
    %360 = vmatpush1.msra.mxu0 %v205
    %361 = vmatprep.subr.mxu0 %v208
    %362 = vmatpush1.msra.mxu0 %v207
    %363 = vmatprep.subr.mxu0 %v210
    %364 = vmatpush1.msra.mxu0 %v209
    %365 = vmatprep.subr.mxu0 %v212
    %366 = vmatpush1.msra.mxu0 %v211
    %367 = vmatprep.subr.mxu0 0.0
    %368 = vmatpush1.msra.mxu0 0.0
    %369 = vmatprep.subr.mxu0 0.0
    %370 = vmatpush1.msra.mxu0 0.0
    %371 = vmatprep.subr.mxu0 0.0
    %372 = vmatpush1.msra.mxu0 0.0
    %373 = vmatprep.subr.mxu0 0.0
    %374 = vmatpush1.msra.mxu0 0.0
    %375 = vmatprep.subr.mxu0 0.0
    %376 = vmatpush1.msra.mxu0 0.0
    %377 = vmatprep.subr.mxu0 0.0
    %378 = vmatpush1.msra.mxu0 0.0
    %379 = vmatprep.subr.mxu0 0.0
    %380 = vmatpush1.msra.mxu0 0.0
    %381 = vmatprep.subr.mxu0 0.0
    %382 = vmatpush1.msra.mxu0 0.0
    %383 = vmatprep.subr.mxu0 0.0
    %384 = vmatpush1.msra.mxu0 0.0
    %385 = vmatprep.subr.mxu0 0.0
    %386 = vmatpush1.msra.mxu0 0.0
    %387 = vmatprep.subr.mxu0 0.0
    %388 = vmatpush1.msra.mxu0 0.0
    %389 = vmatprep.subr.mxu0 0.0
    %390 = vmatpush1.msra.mxu0 0.0
    %391 = vmatprep.subr.mxu0 0.0
    %392 = vmatpush1.msra.mxu0 0.0
    %393 = vmatprep.subr.mxu0 0.0
    %394 = vmatpush1.msra.mxu0 0.0
    %395 = vmatprep.subr.mxu0 0.0
    %396 = vmatpush1.msra.mxu0 0.0
    %397 = vmatprep.subr.mxu0 0.0
    %398 = vmatpush1.msra.mxu0 0.0
    %399 = vmatprep.mubr.f32.mxu0 0.0
    %400 = vmatmul.mubr.f32.gmra.mrb[0].mxu0 %v334
    %v401 = vpop.f32.mrb[0].mxu0
    %v402 = vadd.f32 %v218, %v401
    %v403 = vpop.f32.mrb[0].mxu0
    %v404 = vadd.f32 %v222, %v403
    %405 = vdwg.mxu0
    %v406 = vxor.u32 %v402, 2147483648
    %v407 = vxor.u32 %v404, 2147483648
    %v408 = vmul.f32 %v406, 1.442695
    %v409 = vpow.pop %v408
    %v410 = vmul.f32 %v407, 1.442695
    %v411 = vpow.pop %v410
    %v412 = vadd.f32 %v409, 1.0
    %v413 = vadd.f32 %v411, 1.0
    %v414 = vrcp.pop %v412
    %v415 = vmul.f32 1.0, %v414
    %v416 = vrcp.pop %v413
    %v417 = vmul.f32 1.0, %v416
    %v418 = vtanh.pop %v404
    %v419 = vmul.f32 %v415, 0.0
    %421 = vrot.lane.b32.xlu0 %v418, 64
    %v422 = vpop.permute.xlu0 %421
    %v424 = vmul.f32 %v415, %v422
    %426 = vrot.lane.b32.xlu0 %v424, 64
    %v427 = vpop.permute.xlu0 %426
    %v429 = vadd.f32 %v419, %v427
    %v430 = vtanh.pop %v429
    %432 = vrot.lane.b32.xlu0 %v430, 64
    %v433 = vpop.permute.xlu0 %432
    %v435 = vmul.f32 %v417, %v433
    %s436 = scalar_lea.vmem [#allocation2], 16
    %v437 = vld [vmem:[%s436] sm:$0xff]
    %v438 = vld [vmem:[%s436 + $0x8] sm:$0xff]
    %v440 = vsel %vm227, %v333, 0
    %442 = vmatprep.subr.mxu0 %v166
    %443 = vmatpush1.msra.mxu0 %v165
    %444 = vmatprep.subr.mxu0 %v168
    %445 = vmatpush1.msra.mxu0 %v167
    %446 = vmatprep.subr.mxu0 %v170
    %447 = vmatpush1.msra.mxu0 %v169
    %448 = vmatprep.subr.mxu0 %v172
    %449 = vmatpush1.msra.mxu0 %v171
    %450 = vmatprep.subr.mxu0 %v174
    %451 = vmatpush1.msra.mxu0 %v173
    %452 = vmatprep.subr.mxu0 %v176
    %453 = vmatpush1.msra.mxu0 %v175
    %454 = vmatprep.subr.mxu0 %v178
    %455 = vmatpush1.msra.mxu0 %v177
    %456 = vmatprep.subr.mxu0 %v180
    %457 = vmatpush1.msra.mxu0 %v179
    %458 = vmatprep.subr.mxu0 0.0
    %459 = vmatpush1.msra.mxu0 0.0
    %460 = vmatprep.subr.mxu0 0.0
    %461 = vmatpush1.msra.mxu0 0.0
    %462 = vmatprep.subr.mxu0 0.0
    %463 = vmatpush1.msra.mxu0 0.0
    %464 = vmatprep.subr.mxu0 0.0
    %465 = vmatpush1.msra.mxu0 0.0
    %466 = vmatprep.subr.mxu0 0.0
    %467 = vmatpush1.msra.mxu0 0.0
    %468 = vmatprep.subr.mxu0 0.0
    %469 = vmatpush1.msra.mxu0 0.0
    %470 = vmatprep.subr.mxu0 0.0
    %471 = vmatpush1.msra.mxu0 0.0
    %472 = vmatprep.subr.mxu0 0.0
    %473 = vmatpush1.msra.mxu0 0.0
    %474 = vmatprep.subr.mxu0 0.0
    %475 = vmatpush1.msra.mxu0 0.0
    %476 = vmatprep.subr.mxu0 0.0
    %477 = vmatpush1.msra.mxu0 0.0
    %478 = vmatprep.subr.mxu0 0.0
    %479 = vmatpush1.msra.mxu0 0.0
    %480 = vmatprep.subr.mxu0 0.0
    %481 = vmatpush1.msra.mxu0 0.0
    %482 = vmatprep.subr.mxu0 0.0
    %483 = vmatpush1.msra.mxu0 0.0
    %484 = vmatprep.subr.mxu0 0.0
    %485 = vmatpush1.msra.mxu0 0.0
    %486 = vmatprep.subr.mxu0 0.0
    %487 = vmatpush1.msra.mxu0 0.0
    %488 = vmatprep.subr.mxu0 0.0
    %489 = vmatpush1.msra.mxu0 0.0
    %490 = vmatprep.subr.mxu0 0.0
    %491 = vmatpush1.msra.mxu0 0.0
    %492 = vmatprep.subr.mxu0 0.0
    %493 = vmatpush1.msra.mxu0 0.0
    %494 = vmatprep.subr.mxu0 0.0
    %495 = vmatpush1.msra.mxu0 0.0
    %496 = vmatprep.subr.mxu0 0.0
    %497 = vmatpush1.msra.mxu0 0.0
    %498 = vmatprep.subr.mxu0 0.0
    %499 = vmatpush1.msra.mxu0 0.0
    %500 = vmatprep.subr.mxu0 0.0
    %501 = vmatpush1.msra.mxu0 0.0
    %502 = vmatprep.subr.mxu0 0.0
    %503 = vmatpush1.msra.mxu0 0.0
    %504 = vmatprep.subr.mxu0 0.0
    %505 = vmatpush1.msra.mxu0 0.0
    %506 = vmatprep.mubr.f32.mxu0 0.0
    %507 = vmatmul.mubr.f32.gmra.mrb[0].mxu0 %v440
    %v508 = vpop.f32.mrb[0].mxu0
    %v509 = vadd.f32 0.0, %v508
    %v510 = vpop.f32.mrb[0].mxu0
    %v511 = vadd.f32 0.0, %v510
    %512 = vdwg.mxu0
    %v513 = vadd.f32 %v437, %v509
    %v514 = vadd.f32 %v438, %v511
    %v515 = vxor.u32 %v513, 2147483648
    %v516 = vxor.u32 %v514, 2147483648
    %v517 = vmul.f32 %v515, 1.442695
    %v518 = vpow.pop %v517
    %v519 = vmul.f32 %v516, 1.442695
    %v520 = vpow.pop %v519
    %v521 = vadd.f32 %v518, 1.0
    %v522 = vadd.f32 %v520, 1.0
    %v523 = vrcp.pop %v521
    %v524 = vmul.f32 1.0, %v523
    %v525 = vrcp.pop %v522
    %v526 = vmul.f32 1.0, %v525
    %v527 = vtanh.pop %v514
    %v528 = vmul.f32 %v524, %v327
    %530 = vrot.lane.b32.xlu0 %v527, 64
    %v531 = vpop.permute.xlu0 %530
    %v533 = vmul.f32 %v524, %v531
    %535 = vrot.lane.b32.xlu0 %v533, 64
    %v536 = vpop.permute.xlu0 %535
    %v538 = vadd.f32 %v528, %v536
    %v539 = vtanh.pop %v538
    %541 = vrot.lane.b32.xlu0 %v539, 64
    %v542 = vpop.permute.xlu0 %541
    %v544 = vmul.f32 %v526, %v542
    %546 = vrot.lane.b32.xlu0 %v435, 64
    %v547 = vpop.permute.xlu0 %546
    %v549 = vsel %vm227, %v544, %v547
    %550 = vmatprep.subr.mxu0 %v182
    %551 = vmatpush1.msra.mxu0 %v181
    %552 = vmatprep.subr.mxu0 %v184
    %553 = vmatpush1.msra.mxu0 %v183
    %554 = vmatprep.subr.mxu0 %v186
    %555 = vmatpush1.msra.mxu0 %v185
    %556 = vmatprep.subr.mxu0 %v188
    %557 = vmatpush1.msra.mxu0 %v187
    %558 = vmatprep.subr.mxu0 %v190
    %559 = vmatpush1.msra.mxu0 %v189
    %560 = vmatprep.subr.mxu0 %v192
    %561 = vmatpush1.msra.mxu0 %v191
    %562 = vmatprep.subr.mxu0 %v194
    %563 = vmatpush1.msra.mxu0 %v193
    %564 = vmatprep.subr.mxu0 %v196
    %565 = vmatpush1.msra.mxu0 %v195
    %566 = vmatprep.subr.mxu0 %v198
    %567 = vmatpush1.msra.mxu0 %v197
    %568 = vmatprep.subr.mxu0 %v200
    %569 = vmatpush1.msra.mxu0 %v199
    %570 = vmatprep.subr.mxu0 %v202
    %571 = vmatpush1.msra.mxu0 %v201
    %572 = vmatprep.subr.mxu0 %v204
    %573 = vmatpush1.msra.mxu0 %v203
    %574 = vmatprep.subr.mxu0 %v206
    %575 = vmatpush1.msra.mxu0 %v205
    %576 = vmatprep.subr.mxu0 %v208
    %577 = vmatpush1.msra.mxu0 %v207
    %578 = vmatprep.subr.mxu0 %v210
    %579 = vmatpush1.msra.mxu0 %v209
    %580 = vmatprep.subr.mxu0 %v212
    %581 = vmatpush1.msra.mxu0 %v211
    %582 = vmatprep.subr.mxu0 0.0
    %583 = vmatpush1.msra.mxu0 0.0
    %584 = vmatprep.subr.mxu0 0.0
    %585 = vmatpush1.msra.mxu0 0.0
    %586 = vmatprep.subr.mxu0 0.0
    %587 = vmatpush1.msra.mxu0 0.0
    %588 = vmatprep.subr.mxu0 0.0
    %589 = vmatpush1.msra.mxu0 0.0
    %590 = vmatprep.subr.mxu0 0.0
    %591 = vmatpush1.msra.mxu0 0.0
    %592 = vmatprep.subr.mxu0 0.0
    %593 = vmatpush1.msra.mxu0 0.0
    %594 = vmatprep.subr.mxu0 0.0
    %595 = vmatpush1.msra.mxu0 0.0
    %596 = vmatprep.subr.mxu0 0.0
    %597 = vmatpush1.msra.mxu0 0.0
    %598 = vmatprep.subr.mxu0 0.0
    %599 = vmatpush1.msra.mxu0 0.0
    %600 = vmatprep.subr.mxu0 0.0
    %601 = vmatpush1.msra.mxu0 0.0
    %602 = vmatprep.subr.mxu0 0.0
    %603 = vmatpush1.msra.mxu0 0.0
    %604 = vmatprep.subr.mxu0 0.0
    %605 = vmatpush1.msra.mxu0 0.0
    %606 = vmatprep.subr.mxu0 0.0
    %607 = vmatpush1.msra.mxu0 0.0
    %608 = vmatprep.subr.mxu0 0.0
    %609 = vmatpush1.msra.mxu0 0.0
    %610 = vmatprep.subr.mxu0 0.0
    %611 = vmatpush1.msra.mxu0 0.0
    %612 = vmatprep.subr.mxu0 0.0
    %613 = vmatpush1.msra.mxu0 0.0
    %614 = vmatprep.mubr.f32.mxu0 0.0
    %615 = vmatmul.mubr.f32.gmra.mrb[0].mxu0 %v549
    %v616 = vpop.f32.mrb[0].mxu0
    %v617 = vadd.f32 %v218, %v616
    %v618 = vpop.f32.mrb[0].mxu0
    %v619 = vadd.f32 %v222, %v618
    %620 = vdwg.mxu0
    %v621 = vxor.u32 %v617, 2147483648
    %v622 = vxor.u32 %v619, 2147483648
    %v623 = vmul.f32 %v621, 1.442695
    %v624 = vpow.pop %v623
    %v625 = vmul.f32 %v622, 1.442695
    %v626 = vpow.pop %v625
    %v627 = vadd.f32 %v624, 1.0
    %v628 = vadd.f32 %v626, 1.0
    %v629 = vrcp.pop %v627
    %v630 = vmul.f32 1.0, %v629
    %v631 = vrcp.pop %v628
    %v632 = vmul.f32 1.0, %v631
    %v633 = vtanh.pop %v619
    %v634 = vmul.f32 %v630, %v429
    %636 = vrot.lane.b32.xlu0 %v633, 64
    %v637 = vpop.permute.xlu0 %636
    %v639 = vmul.f32 %v630, %v637
    %641 = vrot.lane.b32.xlu0 %v639, 64
    %v642 = vpop.permute.xlu0 %641
    %v644 = vadd.f32 %v634, %v642
    %v645 = vtanh.pop %v644
    %647 = vrot.lane.b32.xlu0 %v645, 64
    %v648 = vpop.permute.xlu0 %647
    %v650 = vmul.f32 %v632, %v648
    %s651 = scalar_lea.vmem [#allocation2], 32
    %v652 = vld [vmem:[%s651] sm:$0xff]
    %v653 = vld [vmem:[%s651 + $0x8] sm:$0xff]
    %v655 = vsel %vm227, %v544, 0
    %657 = vmatprep.subr.mxu0 %v166
    %658 = vmatpush1.msra.mxu0 %v165
    %659 = vmatprep.subr.mxu0 %v168
    %660 = vmatpush1.msra.mxu0 %v167
    %661 = vmatprep.subr.mxu0 %v170
    %662 = vmatpush1.msra.mxu0 %v169
    %663 = vmatprep.subr.mxu0 %v172
    %664 = vmatpush1.msra.mxu0 %v171
    %665 = vmatprep.subr.mxu0 %v174
    %666 = vmatpush1.msra.mxu0 %v173
    %667 = vmatprep.subr.mxu0 %v176
    %668 = vmatpush1.msra.mxu0 %v175
    %669 = vmatprep.subr.mxu0 %v178
    %670 = vmatpush1.msra.mxu0 %v177
    %671 = vmatprep.subr.mxu0 %v180
    %672 = vmatpush1.msra.mxu0 %v179
    %673 = vmatprep.subr.mxu0 0.0
    %674 = vmatpush1.msra.mxu0 0.0
    %675 = vmatprep.subr.mxu0 0.0
    %676 = vmatpush1.msra.mxu0 0.0
    %677 = vmatprep.subr.mxu0 0.0
    %678 = vmatpush1.msra.mxu0 0.0
    %679 = vmatprep.subr.mxu0 0.0
    %680 = vmatpush1.msra.mxu0 0.0
    %681 = vmatprep.subr.mxu0 0.0
    %682 = vmatpush1.msra.mxu0 0.0
    %683 = vmatprep.subr.mxu0 0.0
    %684 = vmatpush1.msra.mxu0 0.0
    %685 = vmatprep.subr.mxu0 0.0
    %686 = vmatpush1.msra.mxu0 0.0
    %687 = vmatprep.subr.mxu0 0.0
    %688 = vmatpush1.msra.mxu0 0.0
    %689 = vmatprep.subr.mxu0 0.0
    %690 = vmatpush1.msra.mxu0 0.0
    %691 = vmatprep.subr.mxu0 0.0
    %692 = vmatpush1.msra.mxu0 0.0
    %693 = vmatprep.subr.mxu0 0.0
    %694 = vmatpush1.msra.mxu0 0.0
    %695 = vmatprep.subr.mxu0 0.0
    %696 = vmatpush1.msra.mxu0 0.0
    %697 = vmatprep.subr.mxu0 0.0
    %698 = vmatpush1.msra.mxu0 0.0
    %699 = vmatprep.subr.mxu0 0.0
    %700 = vmatpush1.msra.mxu0 0.0
    %701 = vmatprep.subr.mxu0 0.0
    %702 = vmatpush1.msra.mxu0 0.0
    %703 = vmatprep.subr.mxu0 0.0
    %704 = vmatpush1.msra.mxu0 0.0
    %705 = vmatprep.subr.mxu0 0.0
    %706 = vmatpush1.msra.mxu0 0.0
    %707 = vmatprep.subr.mxu0 0.0
    %708 = vmatpush1.msra.mxu0 0.0
    %709 = vmatprep.subr.mxu0 0.0
    %710 = vmatpush1.msra.mxu0 0.0
    %711 = vmatprep.subr.mxu0 0.0
    %712 = vmatpush1.msra.mxu0 0.0
    %713 = vmatprep.subr.mxu0 0.0
    %714 = vmatpush1.msra.mxu0 0.0
    %715 = vmatprep.subr.mxu0 0.0
    %716 = vmatpush1.msra.mxu0 0.0
    %717 = vmatprep.subr.mxu0 0.0
    %718 = vmatpush1.msra.mxu0 0.0
    %719 = vmatprep.subr.mxu0 0.0
    %720 = vmatpush1.msra.mxu0 0.0
    %721 = vmatprep.mubr.f32.mxu0 0.0
    %722 = vmatmul.mubr.f32.gmra.mrb[0].mxu0 %v655
    %v723 = vpop.f32.mrb[0].mxu0
    %v724 = vadd.f32 0.0, %v723
    %v725 = vpop.f32.mrb[0].mxu0
    %v726 = vadd.f32 0.0, %v725
    %727 = vdwg.mxu0
    %v728 = vadd.f32 %v652, %v724
    %v729 = vadd.f32 %v653, %v726
    %v730 = vxor.u32 %v728, 2147483648
    %v731 = vxor.u32 %v729, 2147483648
    %v732 = vmul.f32 %v730, 1.442695
    %v733 = vpow.pop %v732
    %v734 = vmul.f32 %v731, 1.442695
    %v735 = vpow.pop %v734
    %v736 = vadd.f32 %v733, 1.0
    %v737 = vadd.f32 %v735, 1.0
    %v738 = vrcp.pop %v736
    %v739 = vmul.f32 1.0, %v738
    %v740 = vrcp.pop %v737
    %v741 = vmul.f32 1.0, %v740
    %v742 = vtanh.pop %v729
    %v743 = vmul.f32 %v739, %v538
    %745 = vrot.lane.b32.xlu0 %v742, 64
    %v746 = vpop.permute.xlu0 %745
    %v748 = vmul.f32 %v739, %v746
    %750 = vrot.lane.b32.xlu0 %v748, 64
    %v751 = vpop.permute.xlu0 %750
    %v753 = vadd.f32 %v743, %v751
    %v754 = vtanh.pop %v753
    %756 = vrot.lane.b32.xlu0 %v754, 64
    %v757 = vpop.permute.xlu0 %756
    %v759 = vmul.f32 %v741, %v757
    %761 = vrot.lane.b32.xlu0 %v650, 64
    %v762 = vpop.permute.xlu0 %761
    %v764 = vsel %vm227, %v759, %v762
    %765 = vmatprep.subr.mxu0 %v182
    %766 = vmatpush1.msra.mxu0 %v181
    %767 = vmatprep.subr.mxu0 %v184
    %768 = vmatpush1.msra.mxu0 %v183
    %769 = vmatprep.subr.mxu0 %v186
    %770 = vmatpush1.msra.mxu0 %v185
    %771 = vmatprep.subr.mxu0 %v188
    %772 = vmatpush1.msra.mxu0 %v187
    %773 = vmatprep.subr.mxu0 %v190
    %774 = vmatpush1.msra.mxu0 %v189
    %775 = vmatprep.subr.mxu0 %v192
    %776 = vmatpush1.msra.mxu0 %v191
    %777 = vmatprep.subr.mxu0 %v194
    %778 = vmatpush1.msra.mxu0 %v193
    %779 = vmatprep.subr.mxu0 %v196
    %780 = vmatpush1.msra.mxu0 %v195
    %781 = vmatprep.subr.mxu0 %v198
    %782 = vmatpush1.msra.mxu0 %v197
    %783 = vmatprep.subr.mxu0 %v200
    %784 = vmatpush1.msra.mxu0 %v199
    %785 = vmatprep.subr.mxu0 %v202
    %786 = vmatpush1.msra.mxu0 %v201
    %787 = vmatprep.subr.mxu0 %v204
    %788 = vmatpush1.msra.mxu0 %v203
    %789 = vmatprep.subr.mxu0 %v206
    %790 = vmatpush1.msra.mxu0 %v205
    %791 = vmatprep.subr.mxu0 %v208
    %792 = vmatpush1.msra.mxu0 %v207
    %793 = vmatprep.subr.mxu0 %v210
    %794 = vmatpush1.msra.mxu0 %v209
    %795 = vmatprep.subr.mxu0 %v212
    %796 = vmatpush1.msra.mxu0 %v211
    %797 = vmatprep.subr.mxu0 0.0
    %798 = vmatpush1.msra.mxu0 0.0
    %799 = vmatprep.subr.mxu0 0.0
    %800 = vmatpush1.msra.mxu0 0.0
    %801 = vmatprep.subr.mxu0 0.0
    %802 = vmatpush1.msra.mxu0 0.0
    %803 = vmatprep.subr.mxu0 0.0
    %804 = vmatpush1.msra.mxu0 0.0
    %805 = vmatprep.subr.mxu0 0.0
    %806 = vmatpush1.msra.mxu0 0.0
    %807 = vmatprep.subr.mxu0 0.0
    %808 = vmatpush1.msra.mxu0 0.0
    %809 = vmatprep.subr.mxu0 0.0
    %810 = vmatpush1.msra.mxu0 0.0
    %811 = vmatprep.subr.mxu0 0.0
    %812 = vmatpush1.msra.mxu0 0.0
    %813 = vmatprep.subr.mxu0 0.0
    %814 = vmatpush1.msra.mxu0 0.0
    %815 = vmatprep.subr.mxu0 0.0
    %816 = vmatpush1.msra.mxu0 0.0
    %817 = vmatprep.subr.mxu0 0.0
    %818 = vmatpush1.msra.mxu0 0.0
    %819 = vmatprep.subr.mxu0 0.0
    %820 = vmatpush1.msra.mxu0 0.0
    %821 = vmatprep.subr.mxu0 0.0
    %822 = vmatpush1.msra.mxu0 0.0
    %823 = vmatprep.subr.mxu0 0.0
    %824 = vmatpush1.msra.mxu0 0.0
    %825 = vmatprep.subr.mxu0 0.0
    %826 = vmatpush1.msra.mxu0 0.0
    %827 = vmatprep.subr.mxu0 0.0
    %828 = vmatpush1.msra.mxu0 0.0
    %829 = vmatprep.mubr.f32.mxu0 0.0
    %830 = vmatmul.mubr.f32.gmra.mrb[0].mxu0 %v764
    %v831 = vpop.f32.mrb[0].mxu0
    %v832 = vadd.f32 %v218, %v831
    %v833 = vpop.f32.mrb[0].mxu0
    %v834 = vadd.f32 %v222, %v833
    %835 = vdwg.mxu0
    %v836 = vxor.u32 %v832, 2147483648
    %v837 = vxor.u32 %v834, 2147483648
    %v838 = vmul.f32 %v836, 1.442695
    %v839 = vpow.pop %v838
    %v840 = vmul.f32 %v837, 1.442695
    %v841 = vpow.pop %v840
    %v842 = vadd.f32 %v839, 1.0
    %v843 = vadd.f32 %v841, 1.0
    %v844 = vrcp.pop %v842
    %v845 = vmul.f32 1.0, %v844
    %v846 = vrcp.pop %v843
    %v847 = vmul.f32 1.0, %v846
    %v848 = vtanh.pop %v834
    %v849 = vmul.f32 %v845, %v644
    %851 = vrot.lane.b32.xlu0 %v848, 64
    %v852 = vpop.permute.xlu0 %851
    %v854 = vmul.f32 %v845, %v852
    %856 = vrot.lane.b32.xlu0 %v854, 64
    %v857 = vpop.permute.xlu0 %856
    %v859 = vadd.f32 %v849, %v857
    %v860 = vtanh.pop %v859
    %862 = vrot.lane.b32.xlu0 %v860, 64
    %v863 = vpop.permute.xlu0 %862
    %v865 = vmul.f32 %v847, %v863
    %s866 = scalar_lea.vmem [#allocation2], 48
    %v867 = vld [vmem:[%s866] sm:$0xff]
    %v868 = vld [vmem:[%s866 + $0x8] sm:$0xff]
    %v870 = vsel %vm227, %v759, 0
    %872 = vmatprep.subr.mxu0 %v166
    %873 = vmatpush1.msra.mxu0 %v165
    %874 = vmatprep.subr.mxu0 %v168
    %875 = vmatpush1.msra.mxu0 %v167
    %876 = vmatprep.subr.mxu0 %v170
    %877 = vmatpush1.msra.mxu0 %v169
    %878 = vmatprep.subr.mxu0 %v172
    %879 = vmatpush1.msra.mxu0 %v171
    %880 = vmatprep.subr.mxu0 %v174
    %881 = vmatpush1.msra.mxu0 %v173
    %882 = vmatprep.subr.mxu0 %v176
    %883 = vmatpush1.msra.mxu0 %v175
    %884 = vmatprep.subr.mxu0 %v178
    %885 = vmatpush1.msra.mxu0 %v177
    %886 = vmatprep.subr.mxu0 %v180
    %887 = vmatpush1.msra.mxu0 %v179
    %888 = vmatprep.subr.mxu0 0.0
    %889 = vmatpush1.msra.mxu0 0.0
    %890 = vmatprep.subr.mxu0 0.0
    %891 = vmatpush1.msra.mxu0 0.0
    %892 = vmatprep.subr.mxu0 0.0
    %893 = vmatpush1.msra.mxu0 0.0
    %894 = vmatprep.subr.mxu0 0.0
    %895 = vmatpush1.msra.mxu0 0.0
    %896 = vmatprep.subr.mxu0 0.0
    %897 = vmatpush1.msra.mxu0 0.0
    %898 = vmatprep.subr.mxu0 0.0
    %899 = vmatpush1.msra.mxu0 0.0
    %900 = vmatprep.subr.mxu0 0.0
    %901 = vmatpush1.msra.mxu0 0.0
    %902 = vmatprep.subr.mxu0 0.0
    %903 = vmatpush1.msra.mxu0 0.0
    %904 = vmatprep.subr.mxu0 0.0
    %905 = vmatpush1.msra.mxu0 0.0
    %906 = vmatprep.subr.mxu0 0.0
    %907 = vmatpush1.msra.mxu0 0.0
    %908 = vmatprep.subr.mxu0 0.0
    %909 = vmatpush1.msra.mxu0 0.0
    %910 = vmatprep.subr.mxu0 0.0
    %911 = vmatpush1.msra.mxu0 0.0
    %912 = vmatprep.subr.mxu0 0.0
    %913 = vmatpush1.msra.mxu0 0.0
    %914 = vmatprep.subr.mxu0 0.0
    %915 = vmatpush1.msra.mxu0 0.0
    %916 = vmatprep.subr.mxu0 0.0
    %917 = vmatpush1.msra.mxu0 0.0
    %918 = vmatprep.subr.mxu0 0.0
    %919 = vmatpush1.msra.mxu0 0.0
    %920 = vmatprep.subr.mxu0 0.0
    %921 = vmatpush1.msra.mxu0 0.0
    %922 = vmatprep.subr.mxu0 0.0
    %923 = vmatpush1.msra.mxu0 0.0
    %924 = vmatprep.subr.mxu0 0.0
    %925 = vmatpush1.msra.mxu0 0.0
    %926 = vmatprep.subr.mxu0 0.0
    %927 = vmatpush1.msra.mxu0 0.0
    %928 = vmatprep.subr.mxu0 0.0
    %929 = vmatpush1.msra.mxu0 0.0
    %930 = vmatprep.subr.mxu0 0.0
    %931 = vmatpush1.msra.mxu0 0.0
    %932 = vmatprep.subr.mxu0 0.0
    %933 = vmatpush1.msra.mxu0 0.0
    %934 = vmatprep.subr.mxu0 0.0
    %935 = vmatpush1.msra.mxu0 0.0
    %936 = vmatprep.mubr.f32.mxu0 0.0
    %937 = vmatmul.mubr.f32.gmra.mrb[0].mxu0 %v870
    %v938 = vpop.f32.mrb[0].mxu0
    %v939 = vadd.f32 0.0, %v938
    %v940 = vpop.f32.mrb[0].mxu0
    %v941 = vadd.f32 0.0, %v940
    %942 = vdwg.mxu0
    %v943 = vadd.f32 %v867, %v939
    %v944 = vadd.f32 %v868, %v941
    %v945 = vxor.u32 %v943, 2147483648
    %v946 = vxor.u32 %v944, 2147483648
    %v947 = vmul.f32 %v945, 1.442695
    %v948 = vpow.pop %v947
    %v949 = vmul.f32 %v946, 1.442695
    %v950 = vpow.pop %v949
    %v951 = vadd.f32 %v948, 1.0
    %v952 = vadd.f32 %v950, 1.0
    %v953 = vrcp.pop %v951
    %v954 = vmul.f32 1.0, %v953
    %v955 = vrcp.pop %v952
    %v956 = vmul.f32 1.0, %v955
    %v957 = vtanh.pop %v944
    %v958 = vmul.f32 %v954, %v753
    %960 = vrot.lane.b32.xlu0 %v957, 64
    %v961 = vpop.permute.xlu0 %960
    %v963 = vmul.f32 %v954, %v961
    %965 = vrot.lane.b32.xlu0 %v963, 64
    %v966 = vpop.permute.xlu0 %965
    %v968 = vadd.f32 %v958, %v966
    %v969 = vtanh.pop %v968
    %971 = vrot.lane.b32.xlu0 %v969, 64
    %v972 = vpop.permute.xlu0 %971
    %v974 = vmul.f32 %v956, %v972
    %976 = vrot.lane.b32.xlu0 %v865, 64
    %v977 = vpop.permute.xlu0 %976
    %v979 = vsel %vm227, %v974, %v977
    %980 = vmatprep.subr.mxu0 %v182
    %981 = vmatpush1.msra.mxu0 %v181
    %982 = vmatprep.subr.mxu0 %v184
    %983 = vmatpush1.msra.mxu0 %v183
    %984 = vmatprep.subr.mxu0 %v186
    %985 = vmatpush1.msra.mxu0 %v185
    %986 = vmatprep.subr.mxu0 %v188
    %987 = vmatpush1.msra.mxu0 %v187
    %988 = vmatprep.subr.mxu0 %v190
    %989 = vmatpush1.msra.mxu0 %v189
    %990 = vmatprep.subr.mxu0 %v192
    %991 = vmatpush1.msra.mxu0 %v191
    %992 = vmatprep.subr.mxu0 %v194
    %993 = vmatpush1.msra.mxu0 %v193
    %994 = vmatprep.subr.mxu0 %v196
    %995 = vmatpush1.msra.mxu0 %v195
    %996 = vmatprep.subr.mxu0 %v198
    %997 = vmatpush1.msra.mxu0 %v197
    %998 = vmatprep.subr.mxu0 %v200
    %999 = vmatpush1.msra.mxu0 %v199
    %1000 = vmatprep.subr.mxu0 %v202
    %1001 = vmatpush1.msra.mxu0 %v201
    %1002 = vmatprep.subr.mxu0 %v204
    %1003 = vmatpush1.msra.mxu0 %v203
    %1004 = vmatprep.subr.mxu0 %v206
    %1005 = vmatpush1.msra.mxu0 %v205
    %1006 = vmatprep.subr.mxu0 %v208
    %1007 = vmatpush1.msra.mxu0 %v207
    %1008 = vmatprep.subr.mxu0 %v210
    %1009 = vmatpush1.msra.mxu0 %v209
    %1010 = vmatprep.subr.mxu0 %v212
    %1011 = vmatpush1.msra.mxu0 %v211
    %1012 = vmatprep.subr.mxu0 0.0
    %1013 = vmatpush1.msra.mxu0 0.0
    %1014 = vmatprep.subr.mxu0 0.0
    %1015 = vmatpush1.msra.mxu0 0.0
    %1016 = vmatprep.subr.mxu0 0.0
    %1017 = vmatpush1.msra.mxu0 0.0
    %1018 = vmatprep.subr.mxu0 0.0
    %1019 = vmatpush1.msra.mxu0 0.0
    %1020 = vmatprep.subr.mxu0 0.0
    %1021 = vmatpush1.msra.mxu0 0.0
    %1022 = vmatprep.subr.mxu0 0.0
    %1023 = vmatpush1.msra.mxu0 0.0
    %1024 = vmatprep.subr.mxu0 0.0
    %1025 = vmatpush1.msra.mxu0 0.0
    %1026 = vmatprep.subr.mxu0 0.0
    %1027 = vmatpush1.msra.mxu0 0.0
    %1028 = vmatprep.subr.mxu0 0.0
    %1029 = vmatpush1.msra.mxu0 0.0
    %1030 = vmatprep.subr.mxu0 0.0
    %1031 = vmatpush1.msra.mxu0 0.0
    %1032 = vmatprep.subr.mxu0 0.0
    %1033 = vmatpush1.msra.mxu0 0.0
    %1034 = vmatprep.subr.mxu0 0.0
    %1035 = vmatpush1.msra.mxu0 0.0
    %1036 = vmatprep.subr.mxu0 0.0
    %1037 = vmatpush1.msra.mxu0 0.0
    %1038 = vmatprep.subr.mxu0 0.0
    %1039 = vmatpush1.msra.mxu0 0.0
    %1040 = vmatprep.subr.mxu0 0.0
    %1041 = vmatpush1.msra.mxu0 0.0
    %1042 = vmatprep.subr.mxu0 0.0
    %1043 = vmatpush1.msra.mxu0 0.0
    %1044 = vmatprep.mubr.f32.mxu0 0.0
    %1045 = vmatmul.mubr.f32.gmra.mrb[0].mxu0 %v979
    %v1046 = vpop.f32.mrb[0].mxu0
    %v1047 = vadd.f32 %v218, %v1046
    %v1048 = vpop.f32.mrb[0].mxu0
    %v1049 = vadd.f32 %v222, %v1048
    %1050 = vdwg.mxu0
    %v1051 = vxor.u32 %v1047, 2147483648
    %v1052 = vxor.u32 %v1049, 2147483648
    %v1053 = vmul.f32 %v1051, 1.442695
    %v1054 = vpow.pop %v1053
    %v1055 = vmul.f32 %v1052, 1.442695
    %v1056 = vpow.pop %v1055
    %v1057 = vadd.f32 %v1054, 1.0
    %v1058 = vadd.f32 %v1056, 1.0
    %v1059 = vrcp.pop %v1057
    %v1060 = vmul.f32 1.0, %v1059
    %v1061 = vrcp.pop %v1058
    %v1062 = vmul.f32 1.0, %v1061
    %v1063 = vtanh.pop %v1049
    %v1064 = vmul.f32 %v1060, %v859
    %1066 = vrot.lane.b32.xlu0 %v1063, 64
    %v1067 = vpop.permute.xlu0 %1066
    %v1069 = vmul.f32 %v1060, %v1067
    %1071 = vrot.lane.b32.xlu0 %v1069, 64
    %v1072 = vpop.permute.xlu0 %1071
    %v1074 = vadd.f32 %v1064, %v1072
    %v1075 = vtanh.pop %v1074
    %1077 = vrot.lane.b32.xlu0 %v1075, 64
    %v1078 = vpop.permute.xlu0 %1077
    %v1080 = vmul.f32 %v1062, %v1078
    %s1081 = scalar_lea.vmem [#allocation2], 64
    %v1082 = vld [vmem:[%s1081] sm:$0xff]
    %v1083 = vld [vmem:[%s1081 + $0x8] sm:$0xff]
    %v1085 = vsel %vm227, %v974, 0
    %1087 = vmatprep.subr.mxu0 %v166
    %1088 = vmatpush1.msra.mxu0 %v165
    %1089 = vmatprep.subr.mxu0 %v168
    %1090 = vmatpush1.msra.mxu0 %v167
    %1091 = vmatprep.subr.mxu0 %v170
    %1092 = vmatpush1.msra.mxu0 %v169
    %1093 = vmatprep.subr.mxu0 %v172
    %1094 = vmatpush1.msra.mxu0 %v171
    %1095 = vmatprep.subr.mxu0 %v174
    %1096 = vmatpush1.msra.mxu0 %v173
    %1097 = vmatprep.subr.mxu0 %v176
    %1098 = vmatpush1.msra.mxu0 %v175
    %1099 = vmatprep.subr.mxu0 %v178
    %1100 = vmatpush1.msra.mxu0 %v177
    %1101 = vmatprep.subr.mxu0 %v180
    %1102 = vmatpush1.msra.mxu0 %v179
    %1103 = vmatprep.subr.mxu0 0.0
    %1104 = vmatpush1.msra.mxu0 0.0
    %1105 = vmatprep.subr.mxu0 0.0
    %1106 = vmatpush1.msra.mxu0 0.0
    %1107 = vmatprep.subr.mxu0 0.0
    %1108 = vmatpush1.msra.mxu0 0.0
    %1109 = vmatprep.subr.mxu0 0.0
    %1110 = vmatpush1.msra.mxu0 0.0
    %1111 = vmatprep.subr.mxu0 0.0
    %1112 = vmatpush1.msra.mxu0 0.0
    %1113 = vmatprep.subr.mxu0 0.0
    %1114 = vmatpush1.msra.mxu0 0.0
    %1115 = vmatprep.subr.mxu0 0.0
    %1116 = vmatpush1.msra.mxu0 0.0
    %1117 = vmatprep.subr.mxu0 0.0
    %1118 = vmatpush1.msra.mxu0 0.0
    %1119 = vmatprep.subr.mxu0 0.0
    %1120 = vmatpush1.msra.mxu0 0.0
    %1121 = vmatprep.subr.mxu0 0.0
    %1122 = vmatpush1.msra.mxu0 0.0
    %1123 = vmatprep.subr.mxu0 0.0
    %1124 = vmatpush1.msra.mxu0 0.0
    %1125 = vmatprep.subr.mxu0 0.0
    %1126 = vmatpush1.msra.mxu0 0.0
    %1127 = vmatprep.subr.mxu0 0.0
    %1128 = vmatpush1.msra.mxu0 0.0
    %1129 = vmatprep.subr.mxu0 0.0
    %1130 = vmatpush1.msra.mxu0 0.0
    %1131 = vmatprep.subr.mxu0 0.0
    %1132 = vmatpush1.msra.mxu0 0.0
    %1133 = vmatprep.subr.mxu0 0.0
    %1134 = vmatpush1.msra.mxu0 0.0
    %1135 = vmatprep.subr.mxu0 0.0
    %1136 = vmatpush1.msra.mxu0 0.0
    %1137 = vmatprep.subr.mxu0 0.0
    %1138 = vmatpush1.msra.mxu0 0.0
    %1139 = vmatprep.subr.mxu0 0.0
    %1140 = vmatpush1.msra.mxu0 0.0
    %1141 = vmatprep.subr.mxu0 0.0
    %1142 = vmatpush1.msra.mxu0 0.0
    %1143 = vmatprep.subr.mxu0 0.0
    %1144 = vmatpush1.msra.mxu0 0.0
    %1145 = vmatprep.subr.mxu0 0.0
    %1146 = vmatpush1.msra.mxu0 0.0
    %1147 = vmatprep.subr.mxu0 0.0
    %1148 = vmatpush1.msra.mxu0 0.0
    %1149 = vmatprep.subr.mxu0 0.0
    %1150 = vmatpush1.msra.mxu0 0.0
    %1151 = vmatprep.mubr.f32.mxu0 0.0
    %1152 = vmatmul.mubr.f32.gmra.mrb[0].mxu0 %v1085
    %v1153 = vpop.f32.mrb[0].mxu0
    %v1154 = vadd.f32 0.0, %v1153
    %v1155 = vpop.f32.mrb[0].mxu0
    %v1156 = vadd.f32 0.0, %v1155
    %1157 = vdwg.mxu0
    %v1158 = vadd.f32 %v1082, %v1154
    %v1159 = vadd.f32 %v1083, %v1156
    %v1160 = vxor.u32 %v1158, 2147483648
    %v1161 = vxor.u32 %v1159, 2147483648
    %v1162 = vmul.f32 %v1160, 1.442695
    %v1163 = vpow.pop %v1162
    %v1164 = vmul.f32 %v1161, 1.442695
    %v1165 = vpow.pop %v1164
    %v1166 = vadd.f32 %v1163, 1.0
    %v1167 = vadd.f32 %v1165, 1.0
    %v1168 = vrcp.pop %v1166
    %v1169 = vmul.f32 1.0, %v1168
    %v1170 = vrcp.pop %v1167
    %v1171 = vmul.f32 1.0, %v1170
    %v1172 = vtanh.pop %v1159
    %v1173 = vmul.f32 %v1169, %v968
    %1175 = vrot.lane.b32.xlu0 %v1172, 64
    %v1176 = vpop.permute.xlu0 %1175
    %v1178 = vmul.f32 %v1169, %v1176
    %1180 = vrot.lane.b32.xlu0 %v1178, 64
    %v1181 = vpop.permute.xlu0 %1180
    %v1183 = vadd.f32 %v1173, %v1181
    %v1184 = vtanh.pop %v1183
    %1186 = vrot.lane.b32.xlu0 %v1184, 64
    %v1187 = vpop.permute.xlu0 %1186
    %v1189 = vmul.f32 %v1171, %v1187
    %1191 = vrot.lane.b32.xlu0 %v1080, 64
    %v1192 = vpop.permute.xlu0 %1191
    %v1194 = vsel %vm227, %v1189, %v1192
    %1195 = vmatprep.subr.mxu0 %v182
    %1196 = vmatpush1.msra.mxu0 %v181
    %1197 = vmatprep.subr.mxu0 %v184
    %1198 = vmatpush1.msra.mxu0 %v183
    %1199 = vmatprep.subr.mxu0 %v186
    %1200 = vmatpush1.msra.mxu0 %v185
    %1201 = vmatprep.subr.mxu0 %v188
    %1202 = vmatpush1.msra.mxu0 %v187
    %1203 = vmatprep.subr.mxu0 %v190
    %1204 = vmatpush1.msra.mxu0 %v189
    %1205 = vmatprep.subr.mxu0 %v192
    %1206 = vmatpush1.msra.mxu0 %v191
    %1207 = vmatprep.subr.mxu0 %v194
    %1208 = vmatpush1.msra.mxu0 %v193
    %1209 = vmatprep.subr.mxu0 %v196
    %1210 = vmatpush1.msra.mxu0 %v195
    %1211 = vmatprep.subr.mxu0 %v198
    %1212 = vmatpush1.msra.mxu0 %v197
    %1213 = vmatprep.subr.mxu0 %v200
    %1214 = vmatpush1.msra.mxu0 %v199
    %1215 = vmatprep.subr.mxu0 %v202
    %1216 = vmatpush1.msra.mxu0 %v201
    %1217 = vmatprep.subr.mxu0 %v204
    %1218 = vmatpush1.msra.mxu0 %v203
    %1219 = vmatprep.subr.mxu0 %v206
    %1220 = vmatpush1.msra.mxu0 %v205
    %1221 = vmatprep.subr.mxu0 %v208
    %1222 = vmatpush1.msra.mxu0 %v207
    %1223 = vmatprep.subr.mxu0 %v210
    %1224 = vmatpush1.msra.mxu0 %v209
    %1225 = vmatprep.subr.mxu0 %v212
    %1226 = vmatpush1.msra.mxu0 %v211
    %1227 = vmatprep.subr.mxu0 0.0
    %1228 = vmatpush1.msra.mxu0 0.0
    %1229 = vmatprep.subr.mxu0 0.0
    %1230 = vmatpush1.msra.mxu0 0.0
    %1231 = vmatprep.subr.mxu0 0.0
    %1232 = vmatpush1.msra.mxu0 0.0
    %1233 = vmatprep.subr.mxu0 0.0
    %1234 = vmatpush1.msra.mxu0 0.0
    %1235 = vmatprep.subr.mxu0 0.0
    %1236 = vmatpush1.msra.mxu0 0.0
    %1237 = vmatprep.subr.mxu0 0.0
    %1238 = vmatpush1.msra.mxu0 0.0
    %1239 = vmatprep.subr.mxu0 0.0
    %1240 = vmatpush1.msra.mxu0 0.0
    %1241 = vmatprep.subr.mxu0 0.0
    %1242 = vmatpush1.msra.mxu0 0.0
    %1243 = vmatprep.subr.mxu0 0.0
    %1244 = vmatpush1.msra.mxu0 0.0
    %1245 = vmatprep.subr.mxu0 0.0
    %1246 = vmatpush1.msra.mxu0 0.0
    %1247 = vmatprep.subr.mxu0 0.0
    %1248 = vmatpush1.msra.mxu0 0.0
    %1249 = vmatprep.subr.mxu0 0.0
    %1250 = vmatpush1.msra.mxu0 0.0
    %1251 = vmatprep.subr.mxu0 0.0
    %1252 = vmatpush1.msra.mxu0 0.0
    %1253 = vmatprep.subr.mxu0 0.0
    %1254 = vmatpush1.msra.mxu0 0.0
    %1255 = vmatprep.subr.mxu0 0.0
    %1256 = vmatpush1.msra.mxu0 0.0
    %1257 = vmatprep.subr.mxu0 0.0
    %1258 = vmatpush1.msra.mxu0 0.0
    %1259 = vmatprep.mubr.f32.mxu0 0.0
    %1260 = vmatmul.mubr.f32.gmra.mrb[0].mxu0 %v1194
    %v1261 = vpop.f32.mrb[0].mxu0
    %v1262 = vadd.f32 %v218, %v1261
    %v1263 = vpop.f32.mrb[0].mxu0
    %v1264 = vadd.f32 %v222, %v1263
    %1265 = vdwg.mxu0
    %v1266 = vxor.u32 %v1262, 2147483648
    %v1267 = vxor.u32 %v1264, 2147483648
    %v1268 = vmul.f32 %v1266, 1.442695
    %v1269 = vpow.pop %v1268
    %v1270 = vmul.f32 %v1267, 1.442695
    %v1271 = vpow.pop %v1270
    %v1272 = vadd.f32 %v1269, 1.0
    %v1273 = vadd.f32 %v1271, 1.0
    %v1274 = vrcp.pop %v1272
    %v1275 = vmul.f32 1.0, %v1274
    %v1276 = vrcp.pop %v1273
    %v1277 = vmul.f32 1.0, %v1276
    %v1278 = vtanh.pop %v1264
    %v1279 = vmul.f32 %v1275, %v1074
    %1281 = vrot.lane.b32.xlu0 %v1278, 64
    %v1282 = vpop.permute.xlu0 %1281
    %v1284 = vmul.f32 %v1275, %v1282
    %1286 = vrot.lane.b32.xlu0 %v1284, 64
    %v1287 = vpop.permute.xlu0 %1286
    %v1289 = vadd.f32 %v1279, %v1287
    %v1290 = vtanh.pop %v1289
    %1292 = vrot.lane.b32.xlu0 %v1290, 64
    %v1293 = vpop.permute.xlu0 %1292
    %v1295 = vmul.f32 %v1277, %v1293
    %s1296 = scalar_lea.vmem [#allocation2], 80
    %v1297 = vld [vmem:[%s1296] sm:$0xff]
    %v1298 = vld [vmem:[%s1296 + $0x8] sm:$0xff]
    %v1300 = vsel %vm227, %v1189, 0
    %1302 = vmatprep.subr.mxu0 %v166
    %1303 = vmatpush1.msra.mxu0 %v165
    %1304 = vmatprep.subr.mxu0 %v168
    %1305 = vmatpush1.msra.mxu0 %v167
    %1306 = vmatprep.subr.mxu0 %v170
    %1307 = vmatpush1.msra.mxu0 %v169
    %1308 = vmatprep.subr.mxu0 %v172
    %1309 = vmatpush1.msra.mxu0 %v171
    %1310 = vmatprep.subr.mxu0 %v174
    %1311 = vmatpush1.msra.mxu0 %v173
    %1312 = vmatprep.subr.mxu0 %v176
    %1313 = vmatpush1.msra.mxu0 %v175
    %1314 = vmatprep.subr.mxu0 %v178
    %1315 = vmatpush1.msra.mxu0 %v177
    %1316 = vmatprep.subr.mxu0 %v180
    %1317 = vmatpush1.msra.mxu0 %v179
    %1318 = vmatprep.subr.mxu0 0.0
    %1319 = vmatpush1.msra.mxu0 0.0
    %1320 = vmatprep.subr.mxu0 0.0
    %1321 = vmatpush1.msra.mxu0 0.0
    %1322 = vmatprep.subr.mxu0 0.0
    %1323 = vmatpush1.msra.mxu0 0.0
    %1324 = vmatprep.subr.mxu0 0.0
    %1325 = vmatpush1.msra.mxu0 0.0
    %1326 = vmatprep.subr.mxu0 0.0
    %1327 = vmatpush1.msra.mxu0 0.0
    %1328 = vmatprep.subr.mxu0 0.0
    %1329 = vmatpush1.msra.mxu0 0.0
    %1330 = vmatprep.subr.mxu0 0.0
    %1331 = vmatpush1.msra.mxu0 0.0
    %1332 = vmatprep.subr.mxu0 0.0
    %1333 = vmatpush1.msra.mxu0 0.0
    %1334 = vmatprep.subr.mxu0 0.0
    %1335 = vmatpush1.msra.mxu0 0.0
    %1336 = vmatprep.subr.mxu0 0.0
    %1337 = vmatpush1.msra.mxu0 0.0
    %1338 = vmatprep.subr.mxu0 0.0
    %1339 = vmatpush1.msra.mxu0 0.0
    %1340 = vmatprep.subr.mxu0 0.0
    %1341 = vmatpush1.msra.mxu0 0.0
    %1342 = vmatprep.subr.mxu0 0.0
    %1343 = vmatpush1.msra.mxu0 0.0
    %1344 = vmatprep.subr.mxu0 0.0
    %1345 = vmatpush1.msra.mxu0 0.0
    %1346 = vmatprep.subr.mxu0 0.0
    %1347 = vmatpush1.msra.mxu0 0.0
    %1348 = vmatprep.subr.mxu0 0.0
    %1349 = vmatpush1.msra.mxu0 0.0
    %1350 = vmatprep.subr.mxu0 0.0
    %1351 = vmatpush1.msra.mxu0 0.0
    %1352 = vmatprep.subr.mxu0 0.0
    %1353 = vmatpush1.msra.mxu0 0.0
    %1354 = vmatprep.subr.mxu0 0.0
    %1355 = vmatpush1.msra.mxu0 0.0
    %1356 = vmatprep.subr.mxu0 0.0
    %1357 = vmatpush1.msra.mxu0 0.0
    %1358 = vmatprep.subr.mxu0 0.0
    %1359 = vmatpush1.msra.mxu0 0.0
    %1360 = vmatprep.subr.mxu0 0.0
    %1361 = vmatpush1.msra.mxu0 0.0
    %1362 = vmatprep.subr.mxu0 0.0
    %1363 = vmatpush1.msra.mxu0 0.0
    %1364 = vmatprep.subr.mxu0 0.0
    %1365 = vmatpush1.msra.mxu0 0.0
    %1366 = vmatprep.mubr.f32.mxu0 0.0
    %1367 = vmatmul.mubr.f32.gmra.mrb[0].mxu0 %v1300
    %v1368 = vpop.f32.mrb[0].mxu0
    %v1369 = vadd.f32 0.0, %v1368
    %v1370 = vpop.f32.mrb[0].mxu0
    %v1371 = vadd.f32 0.0, %v1370
    %1372 = vdwg.mxu0
    %v1373 = vadd.f32 %v1297, %v1369
    %v1374 = vadd.f32 %v1298, %v1371
    %v1375 = vxor.u32 %v1373, 2147483648
    %v1376 = vxor.u32 %v1374, 2147483648
    %v1377 = vmul.f32 %v1375, 1.442695
    %v1378 = vpow.pop %v1377
    %v1379 = vmul.f32 %v1376, 1.442695
    %v1380 = vpow.pop %v1379
    %v1381 = vadd.f32 %v1378, 1.0
    %v1382 = vadd.f32 %v1380, 1.0
    %v1383 = vrcp.pop %v1381
    %v1384 = vmul.f32 1.0, %v1383
    %v1385 = vrcp.pop %v1382
    %v1386 = vmul.f32 1.0, %v1385
    %v1387 = vtanh.pop %v1374
    %v1388 = vmul.f32 %v1384, %v1183
    %1390 = vrot.lane.b32.xlu0 %v1387, 64
    %v1391 = vpop.permute.xlu0 %1390
    %v1393 = vmul.f32 %v1384, %v1391
    %1395 = vrot.lane.b32.xlu0 %v1393, 64
    %v1396 = vpop.permute.xlu0 %1395
    %v1398 = vadd.f32 %v1388, %v1396
    %v1399 = vtanh.pop %v1398
    %1401 = vrot.lane.b32.xlu0 %v1399, 64
    %v1402 = vpop.permute.xlu0 %1401
    %v1404 = vmul.f32 %v1386, %v1402
    %1406 = vrot.lane.b32.xlu0 %v1295, 64
    %v1407 = vpop.permute.xlu0 %1406
    %v1409 = vsel %vm227, %v1404, %v1407
    %1410 = vmatprep.subr.mxu0 %v182
    %1411 = vmatpush1.msra.mxu0 %v181
    %1412 = vmatprep.subr.mxu0 %v184
    %1413 = vmatpush1.msra.mxu0 %v183
    %1414 = vmatprep.subr.mxu0 %v186
    %1415 = vmatpush1.msra.mxu0 %v185
    %1416 = vmatprep.subr.mxu0 %v188
    %1417 = vmatpush1.msra.mxu0 %v187
    %1418 = vmatprep.subr.mxu0 %v190
    %1419 = vmatpush1.msra.mxu0 %v189
    %1420 = vmatprep.subr.mxu0 %v192
    %1421 = vmatpush1.msra.mxu0 %v191
    %1422 = vmatprep.subr.mxu0 %v194
    %1423 = vmatpush1.msra.mxu0 %v193
    %1424 = vmatprep.subr.mxu0 %v196
    %1425 = vmatpush1.msra.mxu0 %v195
    %1426 = vmatprep.subr.mxu0 %v198
    %1427 = vmatpush1.msra.mxu0 %v197
    %1428 = vmatprep.subr.mxu0 %v200
    %1429 = vmatpush1.msra.mxu0 %v199
    %1430 = vmatprep.subr.mxu0 %v202
    %1431 = vmatpush1.msra.mxu0 %v201
    %1432 = vmatprep.subr.mxu0 %v204
    %1433 = vmatpush1.msra.mxu0 %v203
    %1434 = vmatprep.subr.mxu0 %v206
    %1435 = vmatpush1.msra.mxu0 %v205
    %1436 = vmatprep.subr.mxu0 %v208
    %1437 = vmatpush1.msra.mxu0 %v207
    %1438 = vmatprep.subr.mxu0 %v210
    %1439 = vmatpush1.msra.mxu0 %v209
    %1440 = vmatprep.subr.mxu0 %v212
    %1441 = vmatpush1.msra.mxu0 %v211
    %1442 = vmatprep.subr.mxu0 0.0
    %1443 = vmatpush1.msra.mxu0 0.0
    %1444 = vmatprep.subr.mxu0 0.0
    %1445 = vmatpush1.msra.mxu0 0.0
    %1446 = vmatprep.subr.mxu0 0.0
    %1447 = vmatpush1.msra.mxu0 0.0
    %1448 = vmatprep.subr.mxu0 0.0
    %1449 = vmatpush1.msra.mxu0 0.0
    %1450 = vmatprep.subr.mxu0 0.0
    %1451 = vmatpush1.msra.mxu0 0.0
    %1452 = vmatprep.subr.mxu0 0.0
    %1453 = vmatpush1.msra.mxu0 0.0
    %1454 = vmatprep.subr.mxu0 0.0
    %1455 = vmatpush1.msra.mxu0 0.0
    %1456 = vmatprep.subr.mxu0 0.0
    %1457 = vmatpush1.msra.mxu0 0.0
    %1458 = vmatprep.subr.mxu0 0.0
    %1459 = vmatpush1.msra.mxu0 0.0
    %1460 = vmatprep.subr.mxu0 0.0
    %1461 = vmatpush1.msra.mxu0 0.0
    %1462 = vmatprep.subr.mxu0 0.0
    %1463 = vmatpush1.msra.mxu0 0.0
    %1464 = vmatprep.subr.mxu0 0.0
    %1465 = vmatpush1.msra.mxu0 0.0
    %1466 = vmatprep.subr.mxu0 0.0
    %1467 = vmatpush1.msra.mxu0 0.0
    %1468 = vmatprep.subr.mxu0 0.0
    %1469 = vmatpush1.msra.mxu0 0.0
    %1470 = vmatprep.subr.mxu0 0.0
    %1471 = vmatpush1.msra.mxu0 0.0
    %1472 = vmatprep.subr.mxu0 0.0
    %1473 = vmatpush1.msra.mxu0 0.0
    %1474 = vmatprep.mubr.f32.mxu0 0.0
    %1475 = vmatmul.mubr.f32.gmra.mrb[0].mxu0 %v1409
    %v1476 = vpop.f32.mrb[0].mxu0
    %v1477 = vadd.f32 %v218, %v1476
    %v1478 = vpop.f32.mrb[0].mxu0
    %v1479 = vadd.f32 %v222, %v1478
    %1480 = vdwg.mxu0
    %v1481 = vxor.u32 %v1477, 2147483648
    %v1482 = vxor.u32 %v1479, 2147483648
    %v1483 = vmul.f32 %v1481, 1.442695
    %v1484 = vpow.pop %v1483
    %v1485 = vmul.f32 %v1482, 1.442695
    %v1486 = vpow.pop %v1485
    %v1487 = vadd.f32 %v1484, 1.0
    %v1488 = vadd.f32 %v1486, 1.0
    %v1489 = vrcp.pop %v1487
    %v1490 = vmul.f32 1.0, %v1489
    %v1491 = vrcp.pop %v1488
    %v1492 = vmul.f32 1.0, %v1491
    %v1493 = vtanh.pop %v1479
    %v1494 = vmul.f32 %v1490, %v1289
    %1496 = vrot.lane.b32.xlu0 %v1493, 64
    %v1497 = vpop.permute.xlu0 %1496
    %v1499 = vmul.f32 %v1490, %v1497
    %1501 = vrot.lane.b32.xlu0 %v1499, 64
    %v1502 = vpop.permute.xlu0 %1501
    %v1504 = vadd.f32 %v1494, %v1502
    %v1505 = vtanh.pop %v1504
    %1507 = vrot.lane.b32.xlu0 %v1505, 64
    %v1508 = vpop.permute.xlu0 %1507
    %v1510 = vmul.f32 %v1492, %v1508
    %s1511 = scalar_lea.vmem [#allocation2], 96
    %v1512 = vld [vmem:[%s1511] sm:$0xff]
    %v1513 = vld [vmem:[%s1511 + $0x8] sm:$0xff]
    %v1515 = vsel %vm227, %v1404, 0
    %1517 = vmatprep.subr.mxu0 %v166
    %1518 = vmatpush1.msra.mxu0 %v165
    %1519 = vmatprep.subr.mxu0 %v168
    %1520 = vmatpush1.msra.mxu0 %v167
    %1521 = vmatprep.subr.mxu0 %v170
    %1522 = vmatpush1.msra.mxu0 %v169
    %1523 = vmatprep.subr.mxu0 %v172
    %1524 = vmatpush1.msra.mxu0 %v171
    %1525 = vmatprep.subr.mxu0 %v174
    %1526 = vmatpush1.msra.mxu0 %v173
    %1527 = vmatprep.subr.mxu0 %v176
    %1528 = vmatpush1.msra.mxu0 %v175
    %1529 = vmatprep.subr.mxu0 %v178
    %1530 = vmatpush1.msra.mxu0 %v177
    %1531 = vmatprep.subr.mxu0 %v180
    %1532 = vmatpush1.msra.mxu0 %v179
    %1533 = vmatprep.subr.mxu0 0.0
    %1534 = vmatpush1.msra.mxu0 0.0
    %1535 = vmatprep.subr.mxu0 0.0
    %1536 = vmatpush1.msra.mxu0 0.0
    %1537 = vmatprep.subr.mxu0 0.0
    %1538 = vmatpush1.msra.mxu0 0.0
    %1539 = vmatprep.subr.mxu0 0.0
    %1540 = vmatpush1.msra.mxu0 0.0
    %1541 = vmatprep.subr.mxu0 0.0
    %1542 = vmatpush1.msra.mxu0 0.0
    %1543 = vmatprep.subr.mxu0 0.0
    %1544 = vmatpush1.msra.mxu0 0.0
    %1545 = vmatprep.subr.mxu0 0.0
    %1546 = vmatpush1.msra.mxu0 0.0
    %1547 = vmatprep.subr.mxu0 0.0
    %1548 = vmatpush1.msra.mxu0 0.0
    %1549 = vmatprep.subr.mxu0 0.0
    %1550 = vmatpush1.msra.mxu0 0.0
    %1551 = vmatprep.subr.mxu0 0.0
    %1552 = vmatpush1.msra.mxu0 0.0
    %1553 = vmatprep.subr.mxu0 0.0
    %1554 = vmatpush1.msra.mxu0 0.0
    %1555 = vmatprep.subr.mxu0 0.0
    %1556 = vmatpush1.msra.mxu0 0.0
    %1557 = vmatprep.subr.mxu0 0.0
    %1558 = vmatpush1.msra.mxu0 0.0
    %1559 = vmatprep.subr.mxu0 0.0
    %1560 = vmatpush1.msra.mxu0 0.0
    %1561 = vmatprep.subr.mxu0 0.0
    %1562 = vmatpush1.msra.mxu0 0.0
    %1563 = vmatprep.subr.mxu0 0.0
    %1564 = vmatpush1.msra.mxu0 0.0
    %1565 = vmatprep.subr.mxu0 0.0
    %1566 = vmatpush1.msra.mxu0 0.0
    %1567 = vmatprep.subr.mxu0 0.0
    %1568 = vmatpush1.msra.mxu0 0.0
    %1569 = vmatprep.subr.mxu0 0.0
    %1570 = vmatpush1.msra.mxu0 0.0
    %1571 = vmatprep.subr.mxu0 0.0
    %1572 = vmatpush1.msra.mxu0 0.0
    %1573 = vmatprep.subr.mxu0 0.0
    %1574 = vmatpush1.msra.mxu0 0.0
    %1575 = vmatprep.subr.mxu0 0.0
    %1576 = vmatpush1.msra.mxu0 0.0
    %1577 = vmatprep.subr.mxu0 0.0
    %1578 = vmatpush1.msra.mxu0 0.0
    %1579 = vmatprep.subr.mxu0 0.0
    %1580 = vmatpush1.msra.mxu0 0.0
    %1581 = vmatprep.mubr.f32.mxu0 0.0
    %1582 = vmatmul.mubr.f32.gmra.mrb[0].mxu0 %v1515
    %v1583 = vpop.f32.mrb[0].mxu0
    %v1584 = vadd.f32 0.0, %v1583
    %v1585 = vpop.f32.mrb[0].mxu0
    %v1586 = vadd.f32 0.0, %v1585
    %1587 = vdwg.mxu0
    %v1588 = vadd.f32 %v1512, %v1584
    %v1589 = vadd.f32 %v1513, %v1586
    %v1590 = vxor.u32 %v1588, 2147483648
    %v1591 = vxor.u32 %v1589, 2147483648
    %v1592 = vmul.f32 %v1590, 1.442695
    %v1593 = vpow.pop %v1592
    %v1594 = vmul.f32 %v1591, 1.442695
    %v1595 = vpow.pop %v1594
    %v1596 = vadd.f32 %v1593, 1.0
    %v1597 = vadd.f32 %v1595, 1.0
    %v1598 = vrcp.pop %v1596
    %v1599 = vmul.f32 1.0, %v1598
    %v1600 = vrcp.pop %v1597
    %v1601 = vmul.f32 1.0, %v1600
    %v1602 = vtanh.pop %v1589
    %v1603 = vmul.f32 %v1599, %v1398
    %1605 = vrot.lane.b32.xlu0 %v1602, 64
    %v1606 = vpop.permute.xlu0 %1605
    %v1608 = vmul.f32 %v1599, %v1606
    %1610 = vrot.lane.b32.xlu0 %v1608, 64
    %v1611 = vpop.permute.xlu0 %1610
    %v1613 = vadd.f32 %v1603, %v1611
    %v1614 = vtanh.pop %v1613
    %1616 = vrot.lane.b32.xlu0 %v1614, 64
    %v1617 = vpop.permute.xlu0 %1616
    %v1619 = vmul.f32 %v1601, %v1617
    %1621 = vrot.lane.b32.xlu0 %v1510, 64
    %v1622 = vpop.permute.xlu0 %1621
    %v1624 = vsel %vm227, %v1619, %v1622
    %1625 = vmatprep.subr.mxu0 %v182
    %1626 = vmatpush1.msra.mxu0 %v181
    %1627 = vmatprep.subr.mxu0 %v184
    %1628 = vmatpush1.msra.mxu0 %v183
    %1629 = vmatprep.subr.mxu0 %v186
    %1630 = vmatpush1.msra.mxu0 %v185
    %1631 = vmatprep.subr.mxu0 %v188
    %1632 = vmatpush1.msra.mxu0 %v187
    %1633 = vmatprep.subr.mxu0 %v190
    %1634 = vmatpush1.msra.mxu0 %v189
    %1635 = vmatprep.subr.mxu0 %v192
    %1636 = vmatpush1.msra.mxu0 %v191
    %1637 = vmatprep.subr.mxu0 %v194
    %1638 = vmatpush1.msra.mxu0 %v193
    %1639 = vmatprep.subr.mxu0 %v196
    %1640 = vmatpush1.msra.mxu0 %v195
    %1641 = vmatprep.subr.mxu0 %v198
    %1642 = vmatpush1.msra.mxu0 %v197
    %1643 = vmatprep.subr.mxu0 %v200
    %1644 = vmatpush1.msra.mxu0 %v199
    %1645 = vmatprep.subr.mxu0 %v202
    %1646 = vmatpush1.msra.mxu0 %v201
    %1647 = vmatprep.subr.mxu0 %v204
    %1648 = vmatpush1.msra.mxu0 %v203
    %1649 = vmatprep.subr.mxu0 %v206
    %1650 = vmatpush1.msra.mxu0 %v205
    %1651 = vmatprep.subr.mxu0 %v208
    %1652 = vmatpush1.msra.mxu0 %v207
    %1653 = vmatprep.subr.mxu0 %v210
    %1654 = vmatpush1.msra.mxu0 %v209
    %1655 = vmatprep.subr.mxu0 %v212
    %1656 = vmatpush1.msra.mxu0 %v211
    %1657 = vmatprep.subr.mxu0 0.0
    %1658 = vmatpush1.msra.mxu0 0.0
    %1659 = vmatprep.subr.mxu0 0.0
    %1660 = vmatpush1.msra.mxu0 0.0
    %1661 = vmatprep.subr.mxu0 0.0
    %1662 = vmatpush1.msra.mxu0 0.0
    %1663 = vmatprep.subr.mxu0 0.0
    %1664 = vmatpush1.msra.mxu0 0.0
    %1665 = vmatprep.subr.mxu0 0.0
    %1666 = vmatpush1.msra.mxu0 0.0
    %1667 = vmatprep.subr.mxu0 0.0
    %1668 = vmatpush1.msra.mxu0 0.0
    %1669 = vmatprep.subr.mxu0 0.0
    %1670 = vmatpush1.msra.mxu0 0.0
    %1671 = vmatprep.subr.mxu0 0.0
    %1672 = vmatpush1.msra.mxu0 0.0
    %1673 = vmatprep.subr.mxu0 0.0
    %1674 = vmatpush1.msra.mxu0 0.0
    %1675 = vmatprep.subr.mxu0 0.0
    %1676 = vmatpush1.msra.mxu0 0.0
    %1677 = vmatprep.subr.mxu0 0.0
    %1678 = vmatpush1.msra.mxu0 0.0
    %1679 = vmatprep.subr.mxu0 0.0
    %1680 = vmatpush1.msra.mxu0 0.0
    %1681 = vmatprep.subr.mxu0 0.0
    %1682 = vmatpush1.msra.mxu0 0.0
    %1683 = vmatprep.subr.mxu0 0.0
    %1684 = vmatpush1.msra.mxu0 0.0
    %1685 = vmatprep.subr.mxu0 0.0
    %1686 = vmatpush1.msra.mxu0 0.0
    %1687 = vmatprep.subr.mxu0 0.0
    %1688 = vmatpush1.msra.mxu0 0.0
    %1689 = vmatprep.mubr.f32.mxu0 0.0
    %1690 = vmatmul.mubr.f32.gmra.mrb[0].mxu0 %v1624
    %v1691 = vpop.f32.mrb[0].mxu0
    %v1692 = vadd.f32 %v218, %v1691
    %v1693 = vpop.f32.mrb[0].mxu0
    %v1694 = vadd.f32 %v222, %v1693
    %1695 = vdwg.mxu0
    %v1696 = vxor.u32 %v1692, 2147483648
    %v1697 = vxor.u32 %v1694, 2147483648
    %v1698 = vmul.f32 %v1696, 1.442695
    %v1699 = vpow.pop %v1698
    %v1700 = vmul.f32 %v1697, 1.442695
    %v1701 = vpow.pop %v1700
    %v1702 = vadd.f32 %v1699, 1.0
    %v1703 = vadd.f32 %v1701, 1.0
    %v1704 = vrcp.pop %v1702
    %v1705 = vmul.f32 1.0, %v1704
    %v1706 = vrcp.pop %v1703
    %v1707 = vmul.f32 1.0, %v1706
    %v1708 = vtanh.pop %v1694
    %v1709 = vmul.f32 %v1705, %v1504
    %1711 = vrot.lane.b32.xlu0 %v1708, 64
    %v1712 = vpop.permute.xlu0 %1711
    %v1714 = vmul.f32 %v1705, %v1712
    %1716 = vrot.lane.b32.xlu0 %v1714, 64
    %v1717 = vpop.permute.xlu0 %1716
    %v1719 = vadd.f32 %v1709, %v1717
    %v1720 = vtanh.pop %v1719
    %1722 = vrot.lane.b32.xlu0 %v1720, 64
    %v1723 = vpop.permute.xlu0 %1722
    %v1725 = vmul.f32 %v1707, %v1723
    %s1726 = scalar_lea.vmem [#allocation2], 112
    %v1727 = vld [vmem:[%s1726] sm:$0xff]
    %v1728 = vld [vmem:[%s1726 + $0x8] sm:$0xff]
    %v1730 = vsel %vm227, %v1619, 0
    %1732 = vmatprep.subr.mxu0 %v166
    %1733 = vmatpush1.msra.mxu0 %v165
    %1734 = vmatprep.subr.mxu0 %v168
    %1735 = vmatpush1.msra.mxu0 %v167
    %1736 = vmatprep.subr.mxu0 %v170
    %1737 = vmatpush1.msra.mxu0 %v169
    %1738 = vmatprep.subr.mxu0 %v172
    %1739 = vmatpush1.msra.mxu0 %v171
    %1740 = vmatprep.subr.mxu0 %v174
    %1741 = vmatpush1.msra.mxu0 %v173
    %1742 = vmatprep.subr.mxu0 %v176
    %1743 = vmatpush1.msra.mxu0 %v175
    %1744 = vmatprep.subr.mxu0 %v178
    %1745 = vmatpush1.msra.mxu0 %v177
    %1746 = vmatprep.subr.mxu0 %v180
    %1747 = vmatpush1.msra.mxu0 %v179
    %1748 = vmatprep.subr.mxu0 0.0
    %1749 = vmatpush1.msra.mxu0 0.0
    %1750 = vmatprep.subr.mxu0 0.0
    %1751 = vmatpush1.msra.mxu0 0.0
    %1752 = vmatprep.subr.mxu0 0.0
    %1753 = vmatpush1.msra.mxu0 0.0
    %1754 = vmatprep.subr.mxu0 0.0
    %1755 = vmatpush1.msra.mxu0 0.0
    %1756 = vmatprep.subr.mxu0 0.0
    %1757 = vmatpush1.msra.mxu0 0.0
    %1758 = vmatprep.subr.mxu0 0.0
    %1759 = vmatpush1.msra.mxu0 0.0
    %1760 = vmatprep.subr.mxu0 0.0
    %1761 = vmatpush1.msra.mxu0 0.0
    %1762 = vmatprep.subr.mxu0 0.0
    %1763 = vmatpush1.msra.mxu0 0.0
    %1764 = vmatprep.subr.mxu0 0.0
    %1765 = vmatpush1.msra.mxu0 0.0
    %1766 = vmatprep.subr.mxu0 0.0
    %1767 = vmatpush1.msra.mxu0 0.0
    %1768 = vmatprep.subr.mxu0 0.0
    %1769 = vmatpush1.msra.mxu0 0.0
    %1770 = vmatprep.subr.mxu0 0.0
    %1771 = vmatpush1.msra.mxu0 0.0
    %1772 = vmatprep.subr.mxu0 0.0
    %1773 = vmatpush1.msra.mxu0 0.0
    %1774 = vmatprep.subr.mxu0 0.0
    %1775 = vmatpush1.msra.mxu0 0.0
    %1776 = vmatprep.subr.mxu0 0.0
    %1777 = vmatpush1.msra.mxu0 0.0
    %1778 = vmatprep.subr.mxu0 0.0
    %1779 = vmatpush1.msra.mxu0 0.0
    %1780 = vmatprep.subr.mxu0 0.0
    %1781 = vmatpush1.msra.mxu0 0.0
    %1782 = vmatprep.subr.mxu0 0.0
    %1783 = vmatpush1.msra.mxu0 0.0
    %1784 = vmatprep.subr.mxu0 0.0
    %1785 = vmatpush1.msra.mxu0 0.0
    %1786 = vmatprep.subr.mxu0 0.0
    %1787 = vmatpush1.msra.mxu0 0.0
    %1788 = vmatprep.subr.mxu0 0.0
    %1789 = vmatpush1.msra.mxu0 0.0
    %1790 = vmatprep.subr.mxu0 0.0
    %1791 = vmatpush1.msra.mxu0 0.0
    %1792 = vmatprep.subr.mxu0 0.0
    %1793 = vmatpush1.msra.mxu0 0.0
    %1794 = vmatprep.subr.mxu0 0.0
    %1795 = vmatpush1.msra.mxu0 0.0
    %1796 = vmatprep.mubr.f32.mxu0 0.0
    %1797 = vmatmul.mubr.f32.gmra.mrb[0].mxu0 %v1730
    %v1798 = vpop.f32.mrb[0].mxu0
    %v1799 = vadd.f32 0.0, %v1798
    %v1800 = vpop.f32.mrb[0].mxu0
    %v1801 = vadd.f32 0.0, %v1800
    %1802 = vdwg.mxu0
    %v1803 = vadd.f32 %v1727, %v1799
    %v1804 = vadd.f32 %v1728, %v1801
    %v1805 = vxor.u32 %v1803, 2147483648
    %v1806 = vxor.u32 %v1804, 2147483648
    %v1807 = vmul.f32 %v1805, 1.442695
    %v1808 = vpow.pop %v1807
    %v1809 = vmul.f32 %v1806, 1.442695
    %v1810 = vpow.pop %v1809
    %v1811 = vadd.f32 %v1808, 1.0
    %v1812 = vadd.f32 %v1810, 1.0
    %v1813 = vrcp.pop %v1811
    %v1814 = vmul.f32 1.0, %v1813
    %v1815 = vrcp.pop %v1812
    %v1816 = vmul.f32 1.0, %v1815
    %v1817 = vtanh.pop %v1804
    %v1818 = vmul.f32 %v1814, %v1613
    %1820 = vrot.lane.b32.xlu0 %v1817, 64
    %v1821 = vpop.permute.xlu0 %1820
    %v1823 = vmul.f32 %v1814, %v1821
    %1825 = vrot.lane.b32.xlu0 %v1823, 64
    %v1826 = vpop.permute.xlu0 %1825
    %v1828 = vadd.f32 %v1818, %v1826
    %v1829 = vtanh.pop %v1828
    %1831 = vrot.lane.b32.xlu0 %v1829, 64
    %v1832 = vpop.permute.xlu0 %1831
    %v1834 = vmul.f32 %v1816, %v1832
    %1836 = vrot.lane.b32.xlu0 %v1725, 64
    %v1837 = vpop.permute.xlu0 %1836
    %v1839 = vsel %vm227, %v1834, %v1837
    %1840 = vmatprep.subr.mxu0 %v182
    %1841 = vmatpush1.msra.mxu0 %v181
    %1842 = vmatprep.subr.mxu0 %v184
    %1843 = vmatpush1.msra.mxu0 %v183
    %1844 = vmatprep.subr.mxu0 %v186
    %1845 = vmatpush1.msra.mxu0 %v185
    %1846 = vmatprep.subr.mxu0 %v188
    %1847 = vmatpush1.msra.mxu0 %v187
    %1848 = vmatprep.subr.mxu0 %v190
    %1849 = vmatpush1.msra.mxu0 %v189
    %1850 = vmatprep.subr.mxu0 %v192
    %1851 = vmatpush1.msra.mxu0 %v191
    %1852 = vmatprep.subr.mxu0 %v194
    %1853 = vmatpush1.msra.mxu0 %v193
    %1854 = vmatprep.subr.mxu0 %v196
    %1855 = vmatpush1.msra.mxu0 %v195
    %1856 = vmatprep.subr.mxu0 %v198
    %1857 = vmatpush1.msra.mxu0 %v197
    %1858 = vmatprep.subr.mxu0 %v200
    %1859 = vmatpush1.msra.mxu0 %v199
    %1860 = vmatprep.subr.mxu0 %v202
    %1861 = vmatpush1.msra.mxu0 %v201
    %1862 = vmatprep.subr.mxu0 %v204
    %1863 = vmatpush1.msra.mxu0 %v203
    %1864 = vmatprep.subr.mxu0 %v206
    %1865 = vmatpush1.msra.mxu0 %v205
    %1866 = vmatprep.subr.mxu0 %v208
    %1867 = vmatpush1.msra.mxu0 %v207
    %1868 = vmatprep.subr.mxu0 %v210
    %1869 = vmatpush1.msra.mxu0 %v209
    %1870 = vmatprep.subr.mxu0 %v212
    %1871 = vmatpush1.msra.mxu0 %v211
    %1872 = vmatprep.subr.mxu0 0.0
    %1873 = vmatpush1.msra.mxu0 0.0
    %1874 = vmatprep.subr.mxu0 0.0
    %1875 = vmatpush1.msra.mxu0 0.0
    %1876 = vmatprep.subr.mxu0 0.0
    %1877 = vmatpush1.msra.mxu0 0.0
    %1878 = vmatprep.subr.mxu0 0.0
    %1879 = vmatpush1.msra.mxu0 0.0
    %1880 = vmatprep.subr.mxu0 0.0
    %1881 = vmatpush1.msra.mxu0 0.0
    %1882 = vmatprep.subr.mxu0 0.0
    %1883 = vmatpush1.msra.mxu0 0.0
    %1884 = vmatprep.subr.mxu0 0.0
    %1885 = vmatpush1.msra.mxu0 0.0
    %1886 = vmatprep.subr.mxu0 0.0
    %1887 = vmatpush1.msra.mxu0 0.0
    %1888 = vmatprep.subr.mxu0 0.0
    %1889 = vmatpush1.msra.mxu0 0.0
    %1890 = vmatprep.subr.mxu0 0.0
    %1891 = vmatpush1.msra.mxu0 0.0
    %1892 = vmatprep.subr.mxu0 0.0
    %1893 = vmatpush1.msra.mxu0 0.0
    %1894 = vmatprep.subr.mxu0 0.0
    %1895 = vmatpush1.msra.mxu0 0.0
    %1896 = vmatprep.subr.mxu0 0.0
    %1897 = vmatpush1.msra.mxu0 0.0
    %1898 = vmatprep.subr.mxu0 0.0
    %1899 = vmatpush1.msra.mxu0 0.0
    %1900 = vmatprep.subr.mxu0 0.0
    %1901 = vmatpush1.msra.mxu0 0.0
    %1902 = vmatprep.subr.mxu0 0.0
    %1903 = vmatpush1.msra.mxu0 0.0
    %1904 = vmatprep.mubr.f32.mxu0 0.0
    %1905 = vmatmul.mubr.f32.gmra.mrb[0].mxu0 %v1839
    %v1906 = vpop.f32.mrb[0].mxu0
    %v1907 = vadd.f32 %v218, %v1906
    %v1908 = vpop.f32.mrb[0].mxu0
    %v1909 = vadd.f32 %v222, %v1908
    %1910 = vdwg.mxu0
    %v1911 = vxor.u32 %v1907, 2147483648
    %v1912 = vxor.u32 %v1909, 2147483648
    %v1913 = vmul.f32 %v1911, 1.442695
    %v1914 = vpow.pop %v1913
    %v1915 = vmul.f32 %v1912, 1.442695
    %v1916 = vpow.pop %v1915
    %v1917 = vadd.f32 %v1914, 1.0
    %v1918 = vadd.f32 %v1916, 1.0
    %v1919 = vrcp.pop %v1917
    %v1920 = vmul.f32 1.0, %v1919
    %v1921 = vrcp.pop %v1918
    %v1922 = vmul.f32 1.0, %v1921
    %v1923 = vtanh.pop %v1909
    %v1924 = vmul.f32 %v1920, %v1719
    %1926 = vrot.lane.b32.xlu0 %v1923, 64
    %v1927 = vpop.permute.xlu0 %1926
    %v1929 = vmul.f32 %v1920, %v1927
    %1931 = vrot.lane.b32.xlu0 %v1929, 64
    %v1932 = vpop.permute.xlu0 %1931
    %v1934 = vadd.f32 %v1924, %v1932
    %v1935 = vtanh.pop %v1934
    %1937 = vrot.lane.b32.xlu0 %v1935, 64
    %v1938 = vpop.permute.xlu0 %1937
    %v1940 = vmul.f32 %v1922, %v1938
    %v1941 = vld [vmem:[%s6] sm:$0xff]
    %v1942 = vld [vmem:[%s6 + $0x8] sm:$0xff]
    %v1943 = vld [vmem:[%s6 + $0x10] sm:$0xff]
    %v1944 = vld [vmem:[%s6 + $0x18] sm:$0xff]
    %v1945 = vld [vmem:[%s6 + $0x20] sm:$0xff]
    %v1946 = vld [vmem:[%s6 + $0x28] sm:$0xff]
    %v1947 = vld [vmem:[%s6 + $0x30] sm:$0xff]
    %v1948 = vld [vmem:[%s6 + $0x38] sm:$0xff]
    %v1949 = vld [vmem:[#allocation3] sm:$0x1]
    %v1951 = vlaneseq
    %v1952 = vshrl.u32 %v1951, 7
    %v1953 = vsub.s32 0, %v1952
    %v1954 = vrot.slane %v1949, %v1953
    %v1957 = vsel %vm227, %v1940, 0
    %1959 = vmatprep.subr.mxu0 0.0
    %1960 = vmatpush1.msra.mxu0 %v1941
    %1961 = vmatprep.subr.mxu0 0.0
    %1962 = vmatpush1.msra.mxu0 %v1942
    %1963 = vmatprep.subr.mxu0 0.0
    %1964 = vmatpush1.msra.mxu0 %v1943
    %1965 = vmatprep.subr.mxu0 0.0
    %1966 = vmatpush1.msra.mxu0 %v1944
    %1967 = vmatprep.subr.mxu0 0.0
    %1968 = vmatpush1.msra.mxu0 %v1945
    %1969 = vmatprep.subr.mxu0 0.0
    %1970 = vmatpush1.msra.mxu0 %v1946
    %1971 = vmatprep.subr.mxu0 0.0
    %1972 = vmatpush1.msra.mxu0 %v1947
    %1973 = vmatprep.subr.mxu0 0.0
    %1974 = vmatpush1.msra.mxu0 %v1948
    %1975 = vmatprep.subr.mxu0 0.0
    %1976 = vmatpush1.msra.mxu0 0.0
    %1977 = vmatprep.subr.mxu0 0.0
    %1978 = vmatpush1.msra.mxu0 0.0
    %1979 = vmatprep.subr.mxu0 0.0
    %1980 = vmatpush1.msra.mxu0 0.0
    %1981 = vmatprep.subr.mxu0 0.0
    %1982 = vmatpush1.msra.mxu0 0.0
    %1983 = vmatprep.subr.mxu0 0.0
    %1984 = vmatpush1.msra.mxu0 0.0
    %1985 = vmatprep.subr.mxu0 0.0
    %1986 = vmatpush1.msra.mxu0 0.0
    %1987 = vmatprep.subr.mxu0 0.0
    %1988 = vmatpush1.msra.mxu0 0.0
    %1989 = vmatprep.subr.mxu0 0.0
    %1990 = vmatpush1.msra.mxu0 0.0
    %1991 = vmatprep.subr.mxu0 0.0
    %1992 = vmatpush1.msra.mxu0 0.0
    %1993 = vmatprep.subr.mxu0 0.0
    %1994 = vmatpush1.msra.mxu0 0.0
    %1995 = vmatprep.subr.mxu0 0.0
    %1996 = vmatpush1.msra.mxu0 0.0
    %1997 = vmatprep.subr.mxu0 0.0
    %1998 = vmatpush1.msra.mxu0 0.0
    %1999 = vmatprep.subr.mxu0 0.0
    %2000 = vmatpush1.msra.mxu0 0.0
    %2001 = vmatprep.subr.mxu0 0.0
    %2002 = vmatpush1.msra.mxu0 0.0
    %2003 = vmatprep.subr.mxu0 0.0
    %2004 = vmatpush1.msra.mxu0 0.0
    %2005 = vmatprep.subr.mxu0 0.0
    %2006 = vmatpush1.msra.mxu0 0.0
    %2007 = vmatprep.subr.mxu0 0.0
    %2008 = vmatpush1.msra.mxu0 0.0
    %2009 = vmatprep.subr.mxu0 0.0
    %2010 = vmatpush1.msra.mxu0 0.0
    %2011 = vmatprep.subr.mxu0 0.0
    %2012 = vmatpush1.msra.mxu0 0.0
    %2013 = vmatprep.subr.mxu0 0.0
    %2014 = vmatpush1.msra.mxu0 0.0
    %2015 = vmatprep.subr.mxu0 0.0
    %2016 = vmatpush1.msra.mxu0 0.0
    %2017 = vmatprep.subr.mxu0 0.0
    %2018 = vmatpush1.msra.mxu0 0.0
    %2019 = vmatprep.subr.mxu0 0.0
    %2020 = vmatpush1.msra.mxu0 0.0
    %2021 = vmatprep.subr.mxu0 0.0
    %2022 = vmatpush1.msra.mxu0 0.0
    %2023 = vmatprep.mubr.f32.mxu0 0.0
    %2024 = vmatmul.mubr.f32.gmra.mrb[0].mxu0 %v1957
    %v2025 = vpop.f32.mrb[0].mxu0
    %v2026 = vadd.f32 %v1954, %v2025
    %v2027 = vpop.f32.mrb[0].mxu0
    %2028 = vdwg.mxu0
    %vm2029 = vcmask 7168
    %2030 = vst.msk [vmem:[%s8] sm:$0xff] %vm2029, %v2026
    // Predicated region
    $region38: #{tpu_custom_call.1} parent=1 // pred_check
      _
    $region39: #{tpu_custom_call.1} parent=1 // pred_check_branch
      %2032 = sbr.rel (0) target = $region41
    $region40: #{tpu_custom_call.1} parent=1 // pred_region
      _
    $region41: #{tpu_custom_call.1} parent=1 // pred_fallthru
      _
    // Predicated region
    $region42: #{tpu_custom_call.1} parent=1 // pred_check
      _
    $region43: #{tpu_custom_call.1} parent=1 // pred_check_branch
      %2034 = sbr.rel (0) target = $region45
    $region44: #{tpu_custom_call.1} parent=1 // pred_region
      _
    $region45: #{tpu_custom_call.1} parent=1 // pred_fallthru
      _
    %2035 = vsyncpa [#allocation5], 1

</llo_original>
